<compile_context>
chip_gen: v6e
topology: v6e:2x2x1
jax: 0.10.0
libtpu: 0.0.40
codegen_flags: <defaults>
</compile_context>

<pallas_src>
import functools

import jax
import jax.numpy as jnp
from jax.experimental import pallas as pl
from jax.experimental.pallas import tpu as pltpu


def _round_up(x, m):
    return (x + m - 1) // m * m


def _pick_roi_tile(n, cap=512):
    """Largest ROI tile <= cap that still leaves >=2 tiles (v7x megacore)."""
    n128 = _round_up(max(n, 1), 128)
    if n128 <= 128:
        return 128
    return max(128, min(cap, _round_up(n128 // 2, 128)))


def _pick_k_tile(d_pad, k_tile_cap):
    """Largest multiple of 128 that divides d_pad exactly and is <= cap."""
    nblk = d_pad // 128
    best = 1
    for f in range(1, nblk + 1):
        if nblk % f == 0 and f * 128 <= k_tile_cap:
            best = f
    return best * 128


def _vmem_limit_bytes(footprint):
    """Footprint + headroom, clamped to the current chip's VMEM capacity."""
    cap = 64 * 1024 * 1024  # conservative default (v7x per-TC VMEM)
    try:
        info = pltpu.get_tpu_info()
        cap = int(getattr(info, "vmem_capacity_bytes", cap))
    except Exception:
        pass
    want = int(footprint * 1.5) + (4 << 20)      # compiler scratch / epilogue temps
    return int(min(max(want, 32 << 20), int(0.9 * cap)))


# ----------------------------------------------------------------------------
# One-time weight preprocessing (hoisted out of the hot path).
# ----------------------------------------------------------------------------
def prepare_box_head_params(params):
    """params: raw f32 (w6,b6,w7,b7,wc,bc,wb,bb) as in the PyTorch module.

    Returns a dict of pre-padded, pre-cast (bf16) weights ready for the kernel.
    """
    w6, b6, w7, b7, wc, bc, wb, bb = params
    d, h = w6.shape
    nc = wc.shape[1]
    nb = wb.shape[1]

    # Fuse cls/box predictor heads and pad to a lane-dense (multiple-of-128)
    # output width so the store path uses unmasked vst.
    p = _round_up(nc + nb, 128)
    wf = jnp.pad(jnp.concatenate([wc, wb], axis=1), ((0, 0), (0, p - (nc + nb))))
    bf = jnp.pad(jnp.concatenate([bc, bb], axis=1), ((0, 0), (0, p - (nc + nb))))

    # Pad the fc6 reduction dim only to a multiple of 128 (K tile will be a
    # divisor of d_pad, so no further padding is needed).
    d_pad = _round_up(d, 128)
    w6p = jnp.pad(w6, ((0, d_pad - d), (0, 0)))

    return {
        "w6": w6p.astype(jnp.bfloat16),
        "b6": b6.astype(jnp.float32),
        "w7": w7.astype(jnp.bfloat16),
        "b7": b7.astype(jnp.float32),
        "wf": wf.astype(jnp.bfloat16),
        "bf": bf.astype(jnp.float32),
        "d": d, "d_pad": d_pad, "h": h, "nc": nc, "nb": nb, "p": p,
    }


# ----------------------------------------------------------------------------
# Pallas kernel: fused box-head MLP with K-tiled fc6.
#   h6   = relu(sum_k x[:, k] @ W6[k, :] + b6)
#   h7   = relu(h6 @ W7 + b7)
#   out  = h7 @ [Wc | Wb]_pad + [bc | bb]_pad   (lane-dense fused predictor)
# ----------------------------------------------------------------------------
def _box_head_mlp_kernel(x_ref, w6_ref, b6_ref, w7_ref, b7_ref,
                         wf_ref, bf_ref, feat_ref, out_ref, acc_ref):
    k = pl.program_id(1)

    @pl.when(k == 0)
    def _():
        acc_ref[...] = jnp.zeros_like(acc_ref)

    # fc6 partial product: bf16 operands on the MXU, f32 accumulate.
    acc_ref[...] += jnp.dot(x_ref[...], w6_ref[...],
                            preferred_element_type=jnp.float32)

    @pl.when(k == pl.num_programs(1) - 1)
    def _():
        h6 = jnp.maximum(acc_ref[...] + b6_ref[...], 0.0)            # f32
        h7 = jnp.dot(h6.astype(jnp.bfloat16), w7_ref[...],
                     preferred_element_type=jnp.float32) + b7_ref[...]
        h7 = jnp.maximum(h7, 0.0)                                     # f32
        feat_ref[...] = h7.astype(feat_ref.dtype)
        out_ref[...] = (jnp.dot(h7.astype(jnp.bfloat16), wf_ref[...],
                                preferred_element_type=jnp.float32)
                        + bf_ref[...]).astype(out_ref.dtype)


def box_head_mlp(pooled_flat, prep, *, roi_tile=None, k_tile=2048,
                 feat_dtype=jnp.bfloat16):
    """pooled_flat: [N, D] (any float).  prep: prepare_box_head_params output.

    Returns (x_feat [N,H] feat_dtype, cls_logits [N,NC] f32, box_reg [N,4*NC] f32).
    """
    n, d = pooled_flat.shape
    assert d == prep["d"], (d, prep["d"])
    d_pad, h, nc, nb, p = prep["d_pad"], prep["h"], prep["nc"], prep["nb"], prep["p"]

    tk = _pick_k_tile(d_pad, k_tile)
    rt = roi_tile if roi_tile is not None else _pick_roi_tile(n)
    n_pad = _round_up(n, rt)

    # Pad ROI/K dims (zeros are harmless: padded rows sliced off below, padded
    # K columns contribute 0) and cast activations to bf16 for the MXU.
    x = jnp.pad(pooled_flat.astype(jnp.bfloat16),
                ((0, n_pad - n), (0, d_pad - d)))

    grid = (n_pad // rt, d_pad // tk)
    feat_bytes = jnp.dtype(feat_dtype).itemsize

    w6_bytes = d_pad * h * 2
    cost = pl.CostEstimate(
        flops=2 * n_pad * (d_pad * h + h * h + h * p),
        transcendentals=0,
        bytes_accessed=(n_pad * d_pad * 2                       # bf16 activations in
                        + w6_bytes * grid[0]                    # W6 re-streamed / ROI tile
                        + (h * h + h * p) * 2                   # bf16 const weights (once)
                        + (2 * h + p) * 4                       # f32 biases
                        + n_pad * h * feat_bytes                # x_feat out
                        + n_pad * p * 4),                       # fused logits out
    )

    # VMEM footprint (double-buffered in/out blocks + f32 accumulator), used to
    # size a generation-aware vmem limit (64 MiB/TC on v7x vs 128 MiB v5e/v6e).
    footprint = (2 * rt * tk * 2                 # x tile
                 + 2 * tk * h * 2                # W6 K slab
                 + 2 * (h * h * 2 + h * p * 2)   # W7 / fused head (grid-invariant)
                 + 2 * (2 * h + p) * 4           # biases
                 + 2 * rt * h * feat_bytes       # x_feat out
                 + 2 * rt * p * 4                # fused out
                 + rt * h * 4)                   # accumulator
    # TODO(synk): single-buffer the grid-invariant W7/Wf/bias blocks
    # (pipeline_mode=pl.Buffered(1)) at production weight sizes to halve their
    # VMEM footprint and buy a larger roi_tile on v7x.
    # TODO(synk): on v7x, store W6 in fp8 (f32 accumulation) to halve the
    # bandwidth-dominant weight stream; requires accuracy validation.

    # Weights/biases are grid-invariant (constant index_map); Pallas skips the
    # re-DMA when the block index does not change.
    const = lambda shape: pl.BlockSpec(shape, lambda i, k: (0, 0))

    x_feat, fused = pl.pallas_call(
        _box_head_mlp_kernel,
        out_shape=(
            jax.ShapeDtypeStruct((n_pad, h), feat_dtype),
            jax.ShapeDtypeStruct((n_pad, p), jnp.float32),
        ),
        grid_spec=pltpu.PrefetchScalarGridSpec(
            num_scalar_prefetch=0,
            grid=grid,
            in_specs=[
                pl.BlockSpec((rt, tk), lambda i, k: (i, k)),     # x ROI/K tile
                pl.BlockSpec((tk, h), lambda i, k: (k, 0)),      # W6 K slab
                const((1, h)),                                    # b6
                const((h, h)),                                    # W7
                const((1, h)),                                    # b7
                const((h, p)),                                    # fused head W
                const((1, p)),                                    # fused head b
            ],
            out_specs=[
                pl.BlockSpec((rt, h), lambda i, k: (i, 0)),
                pl.BlockSpec((rt, p), lambda i, k: (i, 0)),
            ],
            scratch_shapes=[pltpu.VMEM((rt, h), jnp.float32)],
        ),
        compiler_params=pltpu.CompilerParams(
            dimension_semantics=("parallel", "arbitrary"),
            vmem_limit_bytes=_vmem_limit_bytes(footprint),
        ),
        cost_estimate=cost,
    )(x, prep["w6"], prep["b6"], prep["w7"], prep["b7"], prep["wf"], prep["bf"])

    x_feat = x_feat[:n]
    cls_logits = fused[:n, :nc]
    box_reg = fused[:n, nc:nc + nb]
    return x_feat, cls_logits, box_reg


# ----------------------------------------------------------------------------
# ROIAlign-style pooling (plain-JAX glue: data-dependent bilinear gather).
# TODO(synk): exact maskrcnn-benchmark ROIAlign (sampling_ratio, half-pixel
#             alignment, zero-padding OOB samples) and an in-kernel DMA-gather
#             version are not implemented; single bilinear sample per bin.
# ----------------------------------------------------------------------------
def _roi_align_one(features, roi, resolution, spatial_scale):
    # features: [B, C, H, W], roi: [5] = (batch_idx, x1, y1, x2, y2)
    bidx = roi[0].astype(jnp.int32)
    feat = jnp.take(features, bidx, axis=0)           # [C, H, W]
    x1 = roi[1] * spatial_scale
    y1 = roi[2] * spatial_scale
    x2 = roi[3] * spatial_scale
    y2 = roi[4] * spatial_scale
    bin_w = (x2 - x1) / resolution
    bin_h = (y2 - y1) / resolution
    idx = jnp.arange(resolution, dtype=jnp.float32) + 0.5
    xs = x1 + idx * bin_w
    ys = y1 + idx * bin_h
    yy, xx = jnp.meshgrid(ys, xs, indexing="ij")      # [R, R]

    hh, ww = feat.shape[1], feat.shape[2]
    y0 = jnp.floor(yy)
    x0 = jnp.floor(xx)
    wy1 = yy - y0
    wx1 = xx - x0
    wy0 = 1.0 - wy1
    wx0 = 1.0 - wx1

    def gather(yf, xf):
        yi = jnp.clip(yf, 0, hh - 1).astype(jnp.int32)
        xi = jnp.clip(xf, 0, ww - 1).astype(jnp.int32)
        return feat[:, yi, xi]                        # [C, R, R]

    out = (gather(y0, x0) * (wy0 * wx0)
           + gather(y0, x0 + 1.0) * (wy0 * wx1)
           + gather(y0 + 1.0, x0) * (wy1 * wx0)
           + gather(y0 + 1.0, x0 + 1.0) * (wy1 * wx1))
    return out                                         # [C, R, R]


def roi_align(features, rois, resolution, spatial_scale):
    fn = functools.partial(_roi_align_one, resolution=resolution,
                           spatial_scale=spatial_scale)
    return jax.vmap(lambda r: fn(features, r))(rois)   # [N, C, R, R]


# ----------------------------------------------------------------------------
# ROIBoxHead (inference path): pool -> fused MLP kernel.
# ----------------------------------------------------------------------------
def roi_box_head_forward(features, rois, prepared_params, *, resolution,
                         spatial_scale, feat_dtype=jnp.bfloat16):
    pooled = roi_align(features, rois, resolution, spatial_scale)   # [N, C, R, R]
    n = pooled.shape[0]
    # Emit pooled features in bf16 (halves the HBM roundtrip into the kernel).
    pooled_flat = pooled.reshape(n, -1).astype(jnp.bfloat16)        # [N, C*R*R]
    x_feat, cls_logits, box_reg = box_head_mlp(pooled_flat, prepared_params,
                                               feat_dtype=feat_dtype)
    # TODO(synk): post_processor (score thresh / NMS / box decode) and the
    #             training loss_evaluator.subsample have no Pallas equivalent.
    return x_feat, cls_logits, box_reg


def make_params(key, in_dim, rep_size, num_classes):
    ks = jax.random.split(key, 4)
    s = 0.02
    w6 = jax.random.normal(ks[0], (in_dim, rep_size), jnp.float32) * s
    b6 = jnp.zeros((1, rep_size), jnp.float32)
    w7 = jax.random.normal(ks[1], (rep_size, rep_size), jnp.float32) * s
    b7 = jnp.zeros((1, rep_size), jnp.float32)
    wc = jax.random.normal(ks[2], (rep_size, num_classes), jnp.float32) * s
    bc = jnp.zeros((1, num_classes), jnp.float32)
    wb = jax.random.normal(ks[3], (rep_size, 4 * num_classes), jnp.float32) * s
    bb = jnp.zeros((1, 4 * num_classes), jnp.float32)
    return (w6, b6, w7, b7, wc, bc, wb, bb)


if __name__ == "__main__":
    # Small, deterministic config (mirrors additional_info in __init__):
    # OUT_CHANNELS=32, POOLER_RESOLUTION=4, POOLER_SCALE=1.0, NUM_CLASSES=4.
    key = jax.random.PRNGKey(0)
    k_feat, k_roi, k_par = jax.random.split(key, 3)

    B, C, H, W = 2, 32, 16, 16          # layout: NCHW feature maps
    R = 4                                # pooler resolution
    NUM_CLASSES = 4
    REP_SIZE = 128
    N_ROIS = 256                         # auto roi_tile=128 -> 2 ROI tiles (megacore)

    features = jax.random.normal(k_feat, (B, C, H, W), jnp.float32)

    # Proposals: [N, 5] = (batch_idx, x1, y1, x2, y2) in feature-map coords.
    kr = jax.random.split(k_roi, 3)
    bidx = (jnp.arange(N_ROIS) % B).astype(jnp.float32)
    xy1 = jax.random.uniform(kr[0], (N_ROIS, 2), jnp.float32, 0.0, 10.0)
    wh = jax.random.uniform(kr[1], (N_ROIS, 2), jnp.float32, 2.0, 5.0)
    rois = jnp.concatenate([bidx[:, None], xy1, xy1 + wh], axis=1)

    raw_params = make_params(k_par, C * R * R, REP_SIZE, NUM_CLASSES)
    # Weight preprocessing (pad / fuse heads / bf16 cast) done ONCE, off the
    # hot path, per the perf review.
    prep = prepare_box_head_params(raw_params)

    x_feat, cls_logits, box_reg = roi_box_head_forward(
        features, rois, prep, resolution=R, spatial_scale=1.0)
    jax.block_until_ready((x_feat, cls_logits, box_reg))

    # Pure-JAX reference of the MLP head using the same bf16-operand / f32-acc
    # recipe (bounds the expected bf16 divergence).
    pooled = roi_align(features, rois, R, 1.0).reshape(N_ROIS, -1)
    w6, b6, w7, b7, wc, bc, wb, bb = raw_params
    xb = pooled.astype(jnp.bfloat16)
    h6 = jnp.maximum(jnp.dot(xb, w6.astype(jnp.bfloat16),
                             preferred_element_type=jnp.float32) + b6, 0.0)
    h7 = jnp.maximum(jnp.dot(h6.astype(jnp.bfloat16), w7.astype(jnp.bfloat16),
                             preferred_element_type=jnp.float32) + b7, 0.0)
    ref_cls = jnp.dot(h7.astype(jnp.bfloat16), wc.astype(jnp.bfloat16),
                      preferred_element_type=jnp.float32) + bc
    ref_box = jnp.dot(h7.astype(jnp.bfloat16), wb.astype(jnp.bfloat16),
                      preferred_element_type=jnp.float32) + bb

    assert cls_logits.shape == (N_ROIS, NUM_CLASSES)
    assert box_reg.shape == (N_ROIS, 4 * NUM_CLASSES)
    assert x_feat.shape == (N_ROIS, REP_SIZE)
    # x_feat is emitted in bf16 (perf review) -> compare with bf16-level tol.
    assert jnp.allclose(x_feat.astype(jnp.float32), h7, atol=1e-2, rtol=1e-2)
    assert jnp.allclose(cls_logits, ref_cls, atol=5e-3, rtol=5e-3)
    assert jnp.allclose(box_reg, ref_box, atol=5e-3, rtol=5e-3)

    print("KERNEL_OK")
</pallas_src>

<mosaic_0001>
module attributes {stable_mosaic.version = 11 : i64} {
  func.func @_box_head_mlp_kernel(%arg0: i32, %arg1: i32, %arg2: memref<128x512xbf16, #tpu.memory_space<vmem>>, %arg3: memref<512x128xbf16, #tpu.memory_space<vmem>>, %arg4: memref<1x128xf32, #tpu.memory_space<vmem>>, %arg5: memref<128x128xbf16, #tpu.memory_space<vmem>>, %arg6: memref<1x128xf32, #tpu.memory_space<vmem>>, %arg7: memref<128x128xbf16, #tpu.memory_space<vmem>>, %arg8: memref<1x128xf32, #tpu.memory_space<vmem>>, %arg9: memref<128x128xbf16, #tpu.memory_space<vmem>>, %arg10: memref<128x128xf32, #tpu.memory_space<vmem>>, %arg11: memref<128x128xf32, #tpu.memory_space<vmem>>) attributes {dimension_semantics = [#tpu.dimension_semantics<parallel>, #tpu.dimension_semantics<arbitrary>], iteration_bounds = array<i64: 2, 1>, scalar_prefetch = 0 : i64, scratch_operands = 1 : i64, tpu.core_type = #tpu.core_type<tc>, window_params = [{transform_indices = @transform_0, window_bounds = array<i64: 128, 512>}, {transform_indices = @transform_1, window_bounds = array<i64: 512, 128>}, {pipeline_mode = #tpu.pipeline_mode<synchronous>, transform_indices = @transform_2, window_bounds = array<i64: 1, 128>}, {pipeline_mode = #tpu.pipeline_mode<synchronous>, transform_indices = @transform_3, window_bounds = array<i64: 128, 128>}, {pipeline_mode = #tpu.pipeline_mode<synchronous>, transform_indices = @transform_4, window_bounds = array<i64: 1, 128>}, {pipeline_mode = #tpu.pipeline_mode<synchronous>, transform_indices = @transform_5, window_bounds = array<i64: 128, 128>}, {pipeline_mode = #tpu.pipeline_mode<synchronous>, transform_indices = @transform_6, window_bounds = array<i64: 1, 128>}, {transform_indices = @transform_7, window_bounds = array<i64: 128, 128>}, {transform_indices = @transform_8, window_bounds = array<i64: 128, 128>}]} {
    %c0_i32 = arith.constant 0 : i32
    %0 = arith.cmpi eq, %arg1, %c0_i32 : i32
    %1 = arith.extui %0 : i1 to i32
    %c0_i32_0 = arith.constant 0 : i32
    %2 = arith.cmpi ne, %1, %c0_i32_0 : i32
    scf.if %2 {
      %cst_10 = arith.constant 0.000000e+00 : f32
      %12 = vector.broadcast %cst_10 : f32 to vector<128x128xf32>
      %c0_11 = arith.constant 0 : index
      %c0_12 = arith.constant 0 : index
      %13 = vector.load %arg11[%c0_11, %c0_12] : memref<128x128xf32, #tpu.memory_space<vmem>>, vector<128x128xf32>
      tpu.vector_store %arg11[%c0_11, %c0_12], %12 {strides = array<i32>} : memref<128x128xf32, #tpu.memory_space<vmem>>, vector<128x128xf32>,
    } else {
    }
    %c0 = arith.constant 0 : index
    %c0_1 = arith.constant 0 : index
    %3 = vector.load %arg11[%c0, %c0_1] : memref<128x128xf32, #tpu.memory_space<vmem>>, vector<128x128xf32>
    %c0_2 = arith.constant 0 : index
    %c0_3 = arith.constant 0 : index
    %4 = vector.load %arg2[%c0_2, %c0_3] : memref<128x512xbf16, #tpu.memory_space<vmem>>, vector<128x512xbf16>
    %c0_4 = arith.constant 0 : index
    %c0_5 = arith.constant 0 : index
    %5 = vector.load %arg3[%c0_4, %c0_5] : memref<512x128xbf16, #tpu.memory_space<vmem>>, vector<512x128xbf16>
    %cst = arith.constant dense<0.000000e+00> : vector<128x128xf32>
    %6 = tpu.matmul %4, %5, %cst {dimension_numbers = #tpu.dot_dimension_numbers<[1], [0], [0], [1], [0, 0, 1, 1], [], []>} : vector<128x512xbf16>, vector<512x128xbf16>, vector<128x128xf32> -> vector<128x128xf32>
    %7 = arith.addf %3, %6 : vector<128x128xf32>
    %c0_6 = arith.constant 0 : index
    %c0_7 = arith.constant 0 : index
    %8 = vector.load %arg11[%c0_6, %c0_7] : memref<128x128xf32, #tpu.memory_space<vmem>>, vector<128x128xf32>
    tpu.vector_store %arg11[%c0_6, %c0_7], %7 {strides = array<i32>} : memref<128x128xf32, #tpu.memory_space<vmem>>, vector<128x128xf32>,
    %c0_i32_8 = arith.constant 0 : i32
    %9 = arith.cmpi eq, %arg1, %c0_i32_8 : i32
    %10 = arith.extui %9 : i1 to i32
    %c0_i32_9 = arith.constant 0 : i32
    %11 = arith.cmpi ne, %10, %c0_i32_9 : i32
    scf.if %11 {
      %c0_10 = arith.constant 0 : index
      %c0_11 = arith.constant 0 : index
      %12 = vector.load %arg11[%c0_10, %c0_11] : memref<128x128xf32, #tpu.memory_space<vmem>>, vector<128x128xf32>
      %c0_12 = arith.constant 0 : index
      %c0_13 = arith.constant 0 : index
      %13 = vector.load %arg4[%c0_12, %c0_13] : memref<1x128xf32, #tpu.memory_space<vmem>>, vector<1x128xf32>
      %14 = vector.broadcast %13 : vector<1x128xf32> to vector<128x128xf32>
      %15 = arith.addf %12, %14 : vector<128x128xf32>
      %cst_14 = arith.constant 0.000000e+00 : f32
      %16 = vector.broadcast %cst_14 : f32 to vector<128x128xf32>
      %17 = arith.maximumf %15, %16 : vector<128x128xf32>
      %18 = arith.truncf %17 : vector<128x128xf32> to vector<128x128xbf16>
      %c0_15 = arith.constant 0 : index
      %c0_16 = arith.constant 0 : index
      %19 = vector.load %arg5[%c0_15, %c0_16] : memref<128x128xbf16, #tpu.memory_space<vmem>>, vector<128x128xbf16>
      %cst_17 = arith.constant dense<0.000000e+00> : vector<128x128xf32>
      %20 = tpu.matmul %18, %19, %cst_17 {dimension_numbers = #tpu.dot_dimension_numbers<[1], [0], [0], [1], [0, 0, 1, 1], [], []>} : vector<128x128xbf16>, vector<128x128xbf16>, vector<128x128xf32> -> vector<128x128xf32>
      %c0_18 = arith.constant 0 : index
      %c0_19 = arith.constant 0 : index
      %21 = vector.load %arg6[%c0_18, %c0_19] : memref<1x128xf32, #tpu.memory_space<vmem>>, vector<1x128xf32>
      %22 = vector.broadcast %21 : vector<1x128xf32> to vector<128x128xf32>
      %23 = arith.addf %20, %22 : vector<128x128xf32>
      %cst_20 = arith.constant 0.000000e+00 : f32
      %24 = vector.broadcast %cst_20 : f32 to vector<128x128xf32>
      %25 = arith.maximumf %23, %24 : vector<128x128xf32>
      %26 = arith.truncf %25 : vector<128x128xf32> to vector<128x128xbf16>
      %c0_21 = arith.constant 0 : index
      %c0_22 = arith.constant 0 : index
      %27 = vector.load %arg9[%c0_21, %c0_22] : memref<128x128xbf16, #tpu.memory_space<vmem>>, vector<128x128xbf16>
      tpu.vector_store %arg9[%c0_21, %c0_22], %26 {strides = array<i32>} : memref<128x128xbf16, #tpu.memory_space<vmem>>, vector<128x128xbf16>,
      %28 = arith.truncf %25 : vector<128x128xf32> to vector<128x128xbf16>
      %c0_23 = arith.constant 0 : index
      %c0_24 = arith.constant 0 : index
      %29 = vector.load %arg7[%c0_23, %c0_24] : memref<128x128xbf16, #tpu.memory_space<vmem>>, vector<128x128xbf16>
      %cst_25 = arith.constant dense<0.000000e+00> : vector<128x128xf32>
      %30 = tpu.matmul %28, %29, %cst_25 {dimension_numbers = #tpu.dot_dimension_numbers<[1], [0], [0], [1], [0, 0, 1, 1], [], []>} : vector<128x128xbf16>, vector<128x128xbf16>, vector<128x128xf32> -> vector<128x128xf32>
      %c0_26 = arith.constant 0 : index
      %c0_27 = arith.constant 0 : index
      %31 = vector.load %arg8[%c0_26, %c0_27] : memref<1x128xf32, #tpu.memory_space<vmem>>, vector<1x128xf32>
      %32 = vector.broadcast %31 : vector<1x128xf32> to vector<128x128xf32>
      %33 = arith.addf %30, %32 : vector<128x128xf32>
      %c0_28 = arith.constant 0 : index
      %c0_29 = arith.constant 0 : index
      %34 = vector.load %arg10[%c0_28, %c0_29] : memref<128x128xf32, #tpu.memory_space<vmem>>, vector<128x128xf32>
      tpu.vector_store %arg10[%c0_28, %c0_29], %33 {strides = array<i32>} : memref<128x128xf32, #tpu.memory_space<vmem>>, vector<128x128xf32>,
    } else {
    }
    return
  }
  func.func @transform_0(%arg0: i32, %arg1: i32) -> (i32, i32) {
    %c0_i32 = arith.constant 0 : i32
    return %arg0, %arg1 : i32, i32
  }
  func.func @transform_1(%arg0: i32, %arg1: i32) -> (i32, i32) {
    %c0_i32 = arith.constant 0 : i32
    %c0_i32_0 = arith.constant 0 : i32
    return %arg1, %c0_i32 : i32, i32
  }
  func.func @transform_2(%arg0: i32, %arg1: i32) -> (i32, i32) {
    %c0_i32 = arith.constant 0 : i32
    %c0_i32_0 = arith.constant 0 : i32
    %c0_i32_1 = arith.constant 0 : i32
    return %c0_i32, %c0_i32_0 : i32, i32
  }
  func.func @transform_3(%arg0: i32, %arg1: i32) -> (i32, i32) {
    %c0_i32 = arith.constant 0 : i32
    %c0_i32_0 = arith.constant 0 : i32
    %c0_i32_1 = arith.constant 0 : i32
    return %c0_i32, %c0_i32_0 : i32, i32
  }
  func.func @transform_4(%arg0: i32, %arg1: i32) -> (i32, i32) {
    %c0_i32 = arith.constant 0 : i32
    %c0_i32_0 = arith.constant 0 : i32
    %c0_i32_1 = arith.constant 0 : i32
    return %c0_i32, %c0_i32_0 : i32, i32
  }
  func.func @transform_5(%arg0: i32, %arg1: i32) -> (i32, i32) {
    %c0_i32 = arith.constant 0 : i32
    %c0_i32_0 = arith.constant 0 : i32
    %c0_i32_1 = arith.constant 0 : i32
    return %c0_i32, %c0_i32_0 : i32, i32
  }
  func.func @transform_6(%arg0: i32, %arg1: i32) -> (i32, i32) {
    %c0_i32 = arith.constant 0 : i32
    %c0_i32_0 = arith.constant 0 : i32
    %c0_i32_1 = arith.constant 0 : i32
    return %c0_i32, %c0_i32_0 : i32, i32
  }
  func.func @transform_7(%arg0: i32, %arg1: i32) -> (i32, i32) {
    %c0_i32 = arith.constant 0 : i32
    %c0_i32_0 = arith.constant 0 : i32
    return %arg0, %c0_i32 : i32, i32
  }
  func.func @transform_8(%arg0: i32, %arg1: i32) -> (i32, i32) {
    %c0_i32 = arith.constant 0 : i32
    %c0_i32_0 = arith.constant 0 : i32
    return %arg0, %c0_i32 : i32, i32
  }
}

</mosaic_0001>

<llo_original>
// kernel: tpu_custom_call.1
$region0: #{tpu_custom_call.1}
  #allocation0 [shape = 'u32[]', space=smem, size = 0x4, offset = 0x4, fixed_abs, tag = 'smem constant byte address 0x4 - core index']
  #allocation1 [shape = 'u32[144,128]{1,0:T(1,128)}', space=vmem, size = 0x12000, scoped, tag = 'internal scratch']
  #allocation2 [shape = 'f32[128,128]{1,0:T(8,128)}', space=vmem, size = 0x10000, scoped, tag = 'scratch operand']
  %s0 = inlined_call_operand.hbm [shape: bf16[256,512], index: 0, kind: input, shape index: {}]
  %s1 = inlined_call_operand.hbm [shape: bf16[512,128], index: 1, kind: input, shape index: {}]
  %s2 = inlined_call_operand.vmem [shape: f32[1,128], index: 2, kind: input, shape index: {}]
  %s3 = inlined_call_operand.hbm [shape: bf16[128,128], index: 3, kind: input, shape index: {}]
  %s4 = inlined_call_operand.vmem [shape: f32[1,128], index: 4, kind: input, shape index: {}]
  %s5 = inlined_call_operand.hbm [shape: bf16[128,128], index: 5, kind: input, shape index: {}]
  %s6 = inlined_call_operand.vmem [shape: f32[1,128], index: 6, kind: input, shape index: {}]
  %s7 = inlined_call_operand.hbm [shape: bf16[256,128], index: 7, kind: output, shape index: {0}]
  %s8 = inlined_call_operand.hbm [shape: f32[256,128], index: 8, kind: output, shape index: {1}]
  %9 = xla_tuple %s7, %s8
  %s10 = sld [smem:[#allocation0]]
  $region93: #{tpu_custom_call.1} parent=0
    _
  %s12 = ssub.s32 1, %s10
  %s13 = scalar_select 0, %s12, %s10
  $region1: #{tpu_custom_call.1} parent=0
    #allocation3 [shape = 'u8[262144]{0}', space=vmem, size = 0x40000, scoped, tag = 'input window, operand 0']
    #allocation4 [shape = 's32[2]{0}', space=sflag, size = 0x8, scoped, tag = 'scoped memory for tpu_custom_call.1']
    #allocation5 [shape = 's32[2]{0}', space=sflag, size = 0x8, scoped, tag = 'scoped memory for tpu_custom_call.1']
    #allocation6 [shape = 'u8[131072]{0}', space=vmem, size = 0x20000, scoped, tag = 'input window, operand 1, single buffered']
    #allocation7 [shape = 's32[1]{0}', space=sflag, size = 0x4, scoped, tag = 'scoped memory for tpu_custom_call.1']
    #allocation8 [shape = 'u8[32768]{0}', space=vmem, size = 0x8000, scoped, tag = 'input window, operand 3, single buffered']
    #allocation9 [shape = 'u8[32768]{0}', space=vmem, size = 0x8000, scoped, tag = 'input window, operand 5, single buffered']
    #allocation10 [shape = 's32[1]{0}', space=sflag, size = 0x4, scoped, tag = 'scoped memory for tpu_custom_call.1']
    #allocation11 [shape = 'u8[65536]{0}', space=vmem, size = 0x10000, scoped, tag = 'output window, operand 0']
    #allocation12 [shape = 'u8[131072]{0}', space=vmem, size = 0x20000, scoped, tag = 'output window, operand 1']
    #allocation13 [shape = 's32[2]{0}', space=sflag, size = 0x8, scoped, tag = 'scoped memory for tpu_custom_call.1']
    %14 = vsyncpa [#allocation4], 0
    %s15 = scalar_lea.sflag [#allocation4], 1
    %16 = vsyncpa %s15, 0
    %17 = vsyncpa [#allocation7], 0
    %18 = vsyncpa [#allocation10], 0
    %19 = vsyncpa [#allocation5], 0
    %s20 = scalar_lea.sflag [#allocation5], 1
    %21 = vsyncpa %s20, 0
    %22 = vsyncpa [#allocation13], 0
    %s23 = scalar_lea.sflag [#allocation13], 1
    %24 = vsyncpa %s23, 0
    loop: start=0, step=1, limit=4
    $region2: #{tpu_custom_call.1} parent=1 // loop_pre_header
      _
    $region3: #{tpu_custom_call.1} parent=1 // loop_header
      %s26 = sphi 0, %s30
      %p27 = scmp.ge.s32.totalorder %s26, 4
      %s33 = sphi 0, %s45
      %s34 = sphi 0, %s41
      %s35 = sphi 0, %s33
      %s36 = sphi 0, %s34
      %s37 = sphi 0, %s35
      %s38 = sphi 0, %s36
      %s50 = sphi 0, %s52
      %s53 = sphi 0, %s50
      %s54 = sphi 0, %s53
      %s70 = sphi 0, %s54
      %s76 = sphi 0, %s78
      %s79 = sphi 0, %s76
      %s80 = sphi 0, %s79
      %s96 = sphi 0, %s80
      %s100 = sphi 0, %s100
      %s102 = sphi 0, %s100
      %s103 = sphi 0, %s102
      %s117 = sphi 0, %s103
      %s121 = sphi 0, %s121
      %s123 = sphi 0, %s121
      %s124 = sphi 0, %s123
      %s138 = sphi 0, %s124
      %s142 = sphi 0, %s142
      %s144 = sphi 0, %s142
      %s145 = sphi 0, %s144
      %s159 = sphi 0, %s145
      %s163 = sphi 0, %s163
      %s165 = sphi 0, %s163
      %s166 = sphi 0, %s165
      %s180 = sphi 0, %s166
      %s184 = sphi 0, %s184
      %s186 = sphi 0, %s184
      %s187 = sphi 0, %s186
      %s201 = sphi 0, %s187
      %s207 = sphi 0, %s209
      %s210 = sphi 0, %s207
      %s211 = sphi 0, %s210
      %s227 = sphi 0, %s211
      %s233 = sphi 0, %s235
      %s236 = sphi 0, %s233
      %s237 = sphi 0, %s236
      %s253 = sphi 0, %s237
    $region4: #{tpu_custom_call.1} parent=1 // loop_header_branch
      %29 = sbr.rel (%p27) target = $region8
    $region5: #{tpu_custom_call.1} parent=1 // loop_body
      %s31 = ssub.s32 %s26, 1
      %s32 = ssub.s32 %s26, 2
      %s39 = sadd.s32 1, %s34
      %p40 = scmp.ge.s32.totalorder %s39, 1
      %s41 = scalar_select %p40, 0, %s39
      %s42 = sadd.s32 1, %s33
      %s43 = scalar_select %p40, %s42, %s33
      %p44 = scmp.ge.s32.totalorder %s43, 2
      %s45 = scalar_select %p44, 0, %s43
      %s46 = ssub.s32 %s33, %s45
      %s47 = ssub.s32 %s34, %s41
      %s48 = sor.u32 %s46, %s47
      %p49 = scmp.eq.s32.totalorder %s48, 0
      %s51 = sadd.s32 %s50, 1
      %s52 = scalar_select %p49, %s50, %s51
      %p55 = pneg %p49
      %p56 = scmp.eq.s32.totalorder %s26, 1
      %p57 = por %p55, %p56
      %p58 = scmp.ne.s32.totalorder %s50, %s53
      %p59 = scmp.eq.s32.totalorder %s26, 0
      %p60 = por %p58, %p59
      %p61 = scmp.ne.s32.totalorder %s50, %s53
      %p62 = scmp.eq.s32.totalorder %s31, 1
      %p63 = por %p61, %p62
      %p64 = scmp.ne.s32.totalorder %s53, %s54
      %p65 = scmp.eq.s32.totalorder %s31, 0
      %p66 = por %p64, %p65
      %p67 = scmp.ne.s32.totalorder %s53, %s54
      %p68 = scmp.eq.s32.totalorder %s32, 1
      %p69 = por %p67, %p68
      %p71 = scmp.ne.s32.totalorder %s54, %s70
      %p72 = scmp.eq.s32.totalorder %s32, 0
      %p73 = por %p71, %p72
      %s74 = ssub.s32 %s34, %s41
      %p75 = scmp.eq.s32.totalorder %s74, 0
      %s77 = sadd.s32 %s76, 1
      %s78 = scalar_select %p75, %s76, %s77
      %p81 = pneg %p75
      %p82 = scmp.eq.s32.totalorder %s26, 1
      %p83 = por %p81, %p82
      %p84 = scmp.ne.s32.totalorder %s76, %s79
      %p85 = scmp.eq.s32.totalorder %s26, 0
      %p86 = por %p84, %p85
      %p87 = scmp.ne.s32.totalorder %s76, %s79
      %p88 = scmp.eq.s32.totalorder %s31, 1
      %p89 = por %p87, %p88
      %p90 = scmp.ne.s32.totalorder %s79, %s80
      %p91 = scmp.eq.s32.totalorder %s31, 0
      %p92 = por %p90, %p91
      %p93 = scmp.ne.s32.totalorder %s79, %s80
      %p94 = scmp.eq.s32.totalorder %s32, 1
      %p95 = por %p93, %p94
      %p97 = scmp.ne.s32.totalorder %s80, %s96
      %p98 = scmp.eq.s32.totalorder %s32, 0
      %p99 = por %p97, %p98
      %s101 = sadd.s32 %s100, 1
      %p104 = scmp.eq.s32.totalorder %s26, 1
      %p105 = scmp.ne.s32.totalorder %s100, %s102
      %p106 = scmp.eq.s32.totalorder %s26, 0
      %p107 = por %p105, %p106
      %p108 = scmp.ne.s32.totalorder %s100, %s102
      %p109 = scmp.eq.s32.totalorder %s31, 1
      %p110 = por %p108, %p109
      %p111 = scmp.ne.s32.totalorder %s102, %s103
      %p112 = scmp.eq.s32.totalorder %s31, 0
      %p113 = por %p111, %p112
      %p114 = scmp.ne.s32.totalorder %s102, %s103
      %p115 = scmp.eq.s32.totalorder %s32, 1
      %p116 = por %p114, %p115
      %p118 = scmp.ne.s32.totalorder %s103, %s117
      %p119 = scmp.eq.s32.totalorder %s32, 0
      %p120 = por %p118, %p119
      %s122 = sadd.s32 %s121, 1
      %p125 = scmp.eq.s32.totalorder %s26, 1
      %p126 = scmp.ne.s32.totalorder %s121, %s123
      %p127 = scmp.eq.s32.totalorder %s26, 0
      %p128 = por %p126, %p127
      %p129 = scmp.ne.s32.totalorder %s121, %s123
      %p130 = scmp.eq.s32.totalorder %s31, 1
      %p131 = por %p129, %p130
      %p132 = scmp.ne.s32.totalorder %s123, %s124
      %p133 = scmp.eq.s32.totalorder %s31, 0
      %p134 = por %p132, %p133
      %p135 = scmp.ne.s32.totalorder %s123, %s124
      %p136 = scmp.eq.s32.totalorder %s32, 1
      %p137 = por %p135, %p136
      %p139 = scmp.ne.s32.totalorder %s124, %s138
      %p140 = scmp.eq.s32.totalorder %s32, 0
      %p141 = por %p139, %p140
      %s143 = sadd.s32 %s142, 1
      %p146 = scmp.eq.s32.totalorder %s26, 1
      %p147 = scmp.ne.s32.totalorder %s142, %s144
      %p148 = scmp.eq.s32.totalorder %s26, 0
      %p149 = por %p147, %p148
      %p150 = scmp.ne.s32.totalorder %s142, %s144
      %p151 = scmp.eq.s32.totalorder %s31, 1
      %p152 = por %p150, %p151
      %p153 = scmp.ne.s32.totalorder %s144, %s145
      %p154 = scmp.eq.s32.totalorder %s31, 0
      %p155 = por %p153, %p154
      %p156 = scmp.ne.s32.totalorder %s144, %s145
      %p157 = scmp.eq.s32.totalorder %s32, 1
      %p158 = por %p156, %p157
      %p160 = scmp.ne.s32.totalorder %s145, %s159
      %p161 = scmp.eq.s32.totalorder %s32, 0
      %p162 = por %p160, %p161
      %s164 = sadd.s32 %s163, 1
      %p167 = scmp.eq.s32.totalorder %s26, 1
      %p168 = scmp.ne.s32.totalorder %s163, %s165
      %p169 = scmp.eq.s32.totalorder %s26, 0
      %p170 = por %p168, %p169
      %p171 = scmp.ne.s32.totalorder %s163, %s165
      %p172 = scmp.eq.s32.totalorder %s31, 1
      %p173 = por %p171, %p172
      %p174 = scmp.ne.s32.totalorder %s165, %s166
      %p175 = scmp.eq.s32.totalorder %s31, 0
      %p176 = por %p174, %p175
      %p177 = scmp.ne.s32.totalorder %s165, %s166
      %p178 = scmp.eq.s32.totalorder %s32, 1
      %p179 = por %p177, %p178
      %p181 = scmp.ne.s32.totalorder %s166, %s180
      %p182 = scmp.eq.s32.totalorder %s32, 0
      %p183 = por %p181, %p182
      %s185 = sadd.s32 %s184, 1
      %p188 = scmp.eq.s32.totalorder %s26, 1
      %p189 = scmp.ne.s32.totalorder %s184, %s186
      %p190 = scmp.eq.s32.totalorder %s26, 0
      %p191 = por %p189, %p190
      %p192 = scmp.ne.s32.totalorder %s184, %s186
      %p193 = scmp.eq.s32.totalorder %s31, 1
      %p194 = por %p192, %p193
      %p195 = scmp.ne.s32.totalorder %s186, %s187
      %p196 = scmp.eq.s32.totalorder %s31, 0
      %p197 = por %p195, %p196
      %p198 = scmp.ne.s32.totalorder %s186, %s187
      %p199 = scmp.eq.s32.totalorder %s32, 1
      %p200 = por %p198, %p199
      %p202 = scmp.ne.s32.totalorder %s187, %s201
      %p203 = scmp.eq.s32.totalorder %s32, 0
      %p204 = por %p202, %p203
      %s205 = ssub.s32 %s33, %s45
      %p206 = scmp.eq.s32.totalorder %s205, 0
      %s208 = sadd.s32 %s207, 1
      %s209 = scalar_select %p206, %s207, %s208
      %p212 = pneg %p206
      %p213 = scmp.eq.s32.totalorder %s26, 1
      %p214 = por %p212, %p213
      %p215 = scmp.ne.s32.totalorder %s207, %s210
      %p216 = scmp.eq.s32.totalorder %s26, 0
      %p217 = por %p215, %p216
      %p218 = scmp.ne.s32.totalorder %s207, %s210
      %p219 = scmp.eq.s32.totalorder %s31, 1
      %p220 = por %p218, %p219
      %p221 = scmp.ne.s32.totalorder %s210, %s211
      %p222 = scmp.eq.s32.totalorder %s31, 0
      %p223 = por %p221, %p222
      %p224 = scmp.ne.s32.totalorder %s210, %s211
      %p225 = scmp.eq.s32.totalorder %s32, 1
      %p226 = por %p224, %p225
      %p228 = scmp.ne.s32.totalorder %s211, %s227
      %p229 = scmp.eq.s32.totalorder %s32, 0
      %p230 = por %p228, %p229
      %s231 = ssub.s32 %s33, %s45
      %p232 = scmp.eq.s32.totalorder %s231, 0
      %s234 = sadd.s32 %s233, 1
      %s235 = scalar_select %p232, %s233, %s234
      %p238 = pneg %p232
      %p239 = scmp.eq.s32.totalorder %s26, 1
      %p240 = por %p238, %p239
      %p241 = scmp.ne.s32.totalorder %s233, %s236
      %p242 = scmp.eq.s32.totalorder %s26, 0
      %p243 = por %p241, %p242
      %p244 = scmp.ne.s32.totalorder %s233, %s236
      %p245 = scmp.eq.s32.totalorder %s31, 1
      %p246 = por %p244, %p245
      %p247 = scmp.ne.s32.totalorder %s236, %s237
      %p248 = scmp.eq.s32.totalorder %s31, 0
      %p249 = por %p247, %p248
      %p250 = scmp.ne.s32.totalorder %s236, %s237
      %p251 = scmp.eq.s32.totalorder %s32, 1
      %p252 = por %p250, %p251
      %p254 = scmp.ne.s32.totalorder %s237, %s253
      %p255 = scmp.eq.s32.totalorder %s32, 0
      %p256 = por %p254, %p255
      %p257 = scmp.le.s32.totalorder 1, %s26
      %p258 = scmp.lt.s32.totalorder %s26, 3
      %p259 = pnand %p257, %p258
      %p260 = pneg %p259
      // Predicated region
      $region9: #{tpu_custom_call.1} parent=5 // pred_check
        _
      $region10: #{tpu_custom_call.1} parent=5 // pred_check_branch
        %262 = sbr.rel (%p259) target = $region12
      $region11: #{tpu_custom_call.1} parent=5 // pred_region
        %s263 = ssub.s32 %s26, 1
        // Predicated region
        $region13: #{tpu_custom_call.1} parent=11 // pred_check
          %p264 = pneg %p92
        $region14: #{tpu_custom_call.1} parent=11 // pred_check_branch
          %266 = sbr.rel (%p264) target = $region16
        $region15: #{tpu_custom_call.1} parent=11 // pred_region
          %s267 = smul.u32 64, %s36
          %s269 = ssub.s32 4096, 4096
          %270 = vsyncadd [#allocation7], %s269
          %s271 = smul.addr %s267, 64
          %s272 = scalar_lea.hbm %s1, %s271
          %s273 = sshll.u32 [#allocation6], 4
          %s274 = int_to_ptr.vmem [resolvable:$true] %s273
          %279 = dma.hbm_to_vmem [thread:$0]  %s272, 4096, %s274, [#allocation7], 64, 64, 4
        $region16: #{tpu_custom_call.1} parent=11 // pred_fallthru
          _
        // Predicated region
        $region17: #{tpu_custom_call.1} parent=11 // pred_check
          %p280 = pneg %p113
        $region18: #{tpu_custom_call.1} parent=11 // pred_check_branch
          %282 = sbr.rel (%p280) target = $region20
        $region19: #{tpu_custom_call.1} parent=11 // pred_region
          _
        $region20: #{tpu_custom_call.1} parent=11 // pred_fallthru
          _
        // Predicated region
        $region21: #{tpu_custom_call.1} parent=11 // pred_check
          %p283 = pneg %p134
        $region22: #{tpu_custom_call.1} parent=11 // pred_check_branch
          %285 = sbr.rel (%p283) target = $region24
        $region23: #{tpu_custom_call.1} parent=11 // pred_region
          %s287 = ssub.s32 1024, 1024
          %288 = vsyncadd [#allocation7], %s287
          %s289 = sshll.u32 [#allocation8], 4
          %s290 = int_to_ptr.vmem [resolvable:$true] %s289
          %295 = dma.hbm_to_vmem [thread:$0]  %s3, 1024, %s290, [#allocation7], 64, 64, 4
        $region24: #{tpu_custom_call.1} parent=11 // pred_fallthru
          _
        // Predicated region
        $region25: #{tpu_custom_call.1} parent=11 // pred_check
          %p296 = pneg %p155
        $region26: #{tpu_custom_call.1} parent=11 // pred_check_branch
          %298 = sbr.rel (%p296) target = $region28
        $region27: #{tpu_custom_call.1} parent=11 // pred_region
          _
        $region28: #{tpu_custom_call.1} parent=11 // pred_fallthru
          _
        // Predicated region
        $region29: #{tpu_custom_call.1} parent=11 // pred_check
          %p299 = pneg %p176
        $region30: #{tpu_custom_call.1} parent=11 // pred_check_branch
          %301 = sbr.rel (%p299) target = $region32
        $region31: #{tpu_custom_call.1} parent=11 // pred_region
          %s303 = ssub.s32 1024, 1024
          %304 = vsyncadd [#allocation10], %s303
          %s305 = sshll.u32 [#allocation9], 4
          %s306 = int_to_ptr.vmem [resolvable:$true] %s305
          %311 = dma.hbm_to_vmem [thread:$0]  %s5, 1024, %s306, [#allocation10], 64, 64, 4
        $region32: #{tpu_custom_call.1} parent=11 // pred_fallthru
          _
        // Predicated region
        $region33: #{tpu_custom_call.1} parent=11 // pred_check
          %p312 = pneg %p197
        $region34: #{tpu_custom_call.1} parent=11 // pred_check_branch
          %314 = sbr.rel (%p312) target = $region36
        $region35: #{tpu_custom_call.1} parent=11 // pred_region
          _
        $region36: #{tpu_custom_call.1} parent=11 // pred_fallthru
          _
      $region12: #{tpu_custom_call.1} parent=5 // pred_fallthru
        _
      %p315 = scmp.lt.s32.totalorder %s26, 2
      // Predicated region
      $region37: #{tpu_custom_call.1} parent=5 // pred_check
        %p316 = pneg %p315
      $region38: #{tpu_custom_call.1} parent=5 // pred_check_branch
        %318 = sbr.rel (%p316) target = $region40
      $region39: #{tpu_custom_call.1} parent=5 // pred_region
        // Predicated region
        $region41: #{tpu_custom_call.1} parent=39 // pred_check
          %p319 = pneg %p60
        $region42: #{tpu_custom_call.1} parent=39 // pred_check_branch
          %321 = sbr.rel (%p319) target = $region44
        $region43: #{tpu_custom_call.1} parent=39 // pred_region
          %s322 = sand.u32 %s50, 1
          %s323 = scalar_lea.sflag [#allocation4], %s322
          %s324 = sand.u32 %s50, 1
          %s325 = smul.addr %s324, 256
          %s326 = scalar_lea.vmem [#allocation3], %s325
          %s327 = smul.u32 16, %s33
          %s328 = smul.u32 4, %s34
          %s330 = ssub.s32 4096, 4096
          %331 = vsyncadd %s323, %s330
          %s332 = smul.addr %s327, 4
          %s333 = sadd.s32 %s328, %s332
          %s334 = smul.addr %s333, 64
          %s335 = scalar_lea.hbm %s0, %s334
          %s336 = sshll.u32 %s326, 4
          %s337 = int_to_ptr.vmem [resolvable:$true] %s336
          %342 = dma.hbm_to_vmem [thread:$0]  %s335, 4096, %s337, %s323, 256, 256, 16
        $region44: #{tpu_custom_call.1} parent=39 // pred_fallthru
          _
      $region40: #{tpu_custom_call.1} parent=5 // pred_fallthru
        _
      %p343 = scmp.le.s32.totalorder 1, %s26
      %p344 = scmp.lt.s32.totalorder %s26, 3
      %p345 = pnand %p343, %p344
      %p346 = pneg %p345
      // Predicated region
      $region45: #{tpu_custom_call.1} parent=5 // pred_check
        _
      $region46: #{tpu_custom_call.1} parent=5 // pred_check_branch
        %348 = sbr.rel (%p345) target = $region48
      $region47: #{tpu_custom_call.1} parent=5 // pred_region
        %s349 = ssub.s32 %s26, 1
        %s350 = sand.u32 %s53, 1
        %s351 = scalar_lea.sflag [#allocation4], %s350
        %s352 = sand.u32 %s53, 1
        %s353 = smul.addr %s352, 256
        %s354 = scalar_lea.vmem [#allocation3], %s353
        // Predicated region
        $region49: #{tpu_custom_call.1} parent=47 // pred_check
          %p355 = pneg %p66
        $region50: #{tpu_custom_call.1} parent=47 // pred_check_branch
          %357 = sbr.rel (%p355) target = $region52
        $region51: #{tpu_custom_call.1} parent=47 // pred_region
          %358 = dma.done %s351, 4096
        $region52: #{tpu_custom_call.1} parent=47 // pred_fallthru
          _
        // Predicated region
        $region53: #{tpu_custom_call.1} parent=47 // pred_check
          %p359 = pneg %p92
        $region54: #{tpu_custom_call.1} parent=47 // pred_check_branch
          %361 = sbr.rel (%p359) target = $region56
        $region55: #{tpu_custom_call.1} parent=47 // pred_region
          %362 = dma.done [#allocation7], 4096
        $region56: #{tpu_custom_call.1} parent=47 // pred_fallthru
          _
        // Predicated region
        $region57: #{tpu_custom_call.1} parent=47 // pred_check
          %p363 = pneg %p134
        $region58: #{tpu_custom_call.1} parent=47 // pred_check_branch
          %365 = sbr.rel (%p363) target = $region60
        $region59: #{tpu_custom_call.1} parent=47 // pred_region
          %366 = dma.done [#allocation7], 1024
        $region60: #{tpu_custom_call.1} parent=47 // pred_fallthru
          _
        // Predicated region
        $region61: #{tpu_custom_call.1} parent=47 // pred_check
          %p367 = pneg %p176
        $region62: #{tpu_custom_call.1} parent=47 // pred_check_branch
          %369 = sbr.rel (%p367) target = $region64
        $region63: #{tpu_custom_call.1} parent=47 // pred_region
          %370 = dma.done [#allocation10], 1024
        $region64: #{tpu_custom_call.1} parent=47 // pred_fallthru
          _
        %s371 = sand.u32 %s53, 1
        %s372 = scalar_lea.sflag [#allocation4], %s371
        %s373 = sand.u32 %s53, 1
        %s374 = smul.addr %s373, 256
        %s375 = scalar_lea.vmem [#allocation3], %s374
        %p376 = pneg %p66
        %p377 = pneg %p63
        %p378 = pneg %p92
        %p379 = pneg %p89
        %p380 = pneg %p113
        %p381 = pneg %p110
        %p382 = pneg %p134
        %p383 = pneg %p131
        %p384 = pneg %p155
        %p385 = pneg %p152
        %p386 = pneg %p176
        %p387 = pneg %p173
        %p388 = pneg %p197
        %p389 = pneg %p194
        %p390 = pneg %p223
        %p391 = pneg %p220
        %s392 = sand.u32 %s210, 1
        %s393 = scalar_lea.sflag [#allocation5], %s392
        %s394 = sand.u32 %s210, 1
        %s395 = smul.addr %s394, 64
        %s396 = scalar_lea.vmem [#allocation11], %s395
        %p397 = pneg %p249
        %p398 = pneg %p246
        %s399 = sand.u32 %s236, 1
        %s400 = scalar_lea.sflag [#allocation13], %s399
        %s401 = sand.u32 %s236, 1
        %s402 = smul.addr %s401, 128
        %s403 = scalar_lea.vmem [#allocation12], %s402
        %s404 = smul.u32 16, %s35
        %s405 = smul.u32 4, %s36
        %s406 = smul.u32 64, %s36
        %s407 = smul.u32 16, %s35
        %s408 = smul.u32 16, %s35
        %p410 = scmp.eq.s32.totalorder %s36, 0
        // Predicated region
        $region65: #{tpu_custom_call.1} parent=47 // pred_check
          %p411 = pneg %p410
        $region66: #{tpu_custom_call.1} parent=47 // pred_check_branch
          %413 = sbr.rel (%p411) target = $region68
        $region67: #{tpu_custom_call.1} parent=47 // pred_region
          %414 = vst [vmem:[#allocation2] sm:$0xff] 0.0
          %415 = vst [vmem:[#allocation2 + $0x8] sm:$0xff] 0.0
          %416 = vst [vmem:[#allocation2 + $0x10] sm:$0xff] 0.0
          %417 = vst [vmem:[#allocation2 + $0x18] sm:$0xff] 0.0
          %418 = vst [vmem:[#allocation2 + $0x20] sm:$0xff] 0.0
          %419 = vst [vmem:[#allocation2 + $0x28] sm:$0xff] 0.0
          %420 = vst [vmem:[#allocation2 + $0x30] sm:$0xff] 0.0
          %421 = vst [vmem:[#allocation2 + $0x38] sm:$0xff] 0.0
          %422 = vst [vmem:[#allocation2 + $0x40] sm:$0xff] 0.0
          %423 = vst [vmem:[#allocation2 + $0x48] sm:$0xff] 0.0
          %424 = vst [vmem:[#allocation2 + $0x50] sm:$0xff] 0.0
          %425 = vst [vmem:[#allocation2 + $0x58] sm:$0xff] 0.0
          %426 = vst [vmem:[#allocation2 + $0x60] sm:$0xff] 0.0
          %427 = vst [vmem:[#allocation2 + $0x68] sm:$0xff] 0.0
          %428 = vst [vmem:[#allocation2 + $0x70] sm:$0xff] 0.0
          %429 = vst [vmem:[#allocation2 + $0x78] sm:$0xff] 0.0
        $region68: #{tpu_custom_call.1} parent=47 // pred_fallthru
          _
        %v430 = vld [vmem:[#allocation2] sm:$0xff]
        %v431 = vld [vmem:[#allocation2 + $0x8] sm:$0xff]
        %v432 = vld [vmem:[#allocation2 + $0x10] sm:$0xff]
        %v433 = vld [vmem:[#allocation2 + $0x18] sm:$0xff]
        %v434 = vld [vmem:[#allocation2 + $0x20] sm:$0xff]
        %v435 = vld [vmem:[#allocation2 + $0x28] sm:$0xff]
        %v436 = vld [vmem:[#allocation2 + $0x30] sm:$0xff]
        %v437 = vld [vmem:[#allocation2 + $0x38] sm:$0xff]
        %v438 = vld [vmem:[#allocation2 + $0x40] sm:$0xff]
        %v439 = vld [vmem:[#allocation2 + $0x48] sm:$0xff]
        %v440 = vld [vmem:[#allocation2 + $0x50] sm:$0xff]
        %v441 = vld [vmem:[#allocation2 + $0x58] sm:$0xff]
        %v442 = vld [vmem:[#allocation2 + $0x60] sm:$0xff]
        %v443 = vld [vmem:[#allocation2 + $0x68] sm:$0xff]
        %v444 = vld [vmem:[#allocation2 + $0x70] sm:$0xff]
        %v445 = vld [vmem:[#allocation2 + $0x78] sm:$0xff]
        %v446 = vld [vmem:[%s354] sm:$0xff]
        %v447 = vld [vmem:[%s354 + $0x8] sm:$0xff]
        %v448 = vld [vmem:[%s354 + $0x10] sm:$0xff]
        %v449 = vld [vmem:[%s354 + $0x18] sm:$0xff]
        %v450 = vld [vmem:[%s354 + $0x20] sm:$0xff]
        %v451 = vld [vmem:[%s354 + $0x28] sm:$0xff]
        %v452 = vld [vmem:[%s354 + $0x30] sm:$0xff]
        %v453 = vld [vmem:[%s354 + $0x38] sm:$0xff]
        %v454 = vld [vmem:[%s354 + $0x40] sm:$0xff]
        %v455 = vld [vmem:[%s354 + $0x48] sm:$0xff]
        %v456 = vld [vmem:[%s354 + $0x50] sm:$0xff]
        %v457 = vld [vmem:[%s354 + $0x58] sm:$0xff]
        %v458 = vld [vmem:[%s354 + $0x60] sm:$0xff]
        %v459 = vld [vmem:[%s354 + $0x68] sm:$0xff]
        %v460 = vld [vmem:[%s354 + $0x70] sm:$0xff]
        %v461 = vld [vmem:[%s354 + $0x78] sm:$0xff]
        %v462 = vld [vmem:[%s354 + $0x80] sm:$0xff]
        %v463 = vld [vmem:[%s354 + $0x88] sm:$0xff]
        %v464 = vld [vmem:[%s354 + $0x90] sm:$0xff]
        %v465 = vld [vmem:[%s354 + $0x98] sm:$0xff]
        %v466 = vld [vmem:[%s354 + $0xa0] sm:$0xff]
        %v467 = vld [vmem:[%s354 + $0xa8] sm:$0xff]
        %v468 = vld [vmem:[%s354 + $0xb0] sm:$0xff]
        %v469 = vld [vmem:[%s354 + $0xb8] sm:$0xff]
        %v470 = vld [vmem:[%s354 + $0xc0] sm:$0xff]
        %v471 = vld [vmem:[%s354 + $0xc8] sm:$0xff]
        %v472 = vld [vmem:[%s354 + $0xd0] sm:$0xff]
        %v473 = vld [vmem:[%s354 + $0xd8] sm:$0xff]
        %v474 = vld [vmem:[%s354 + $0xe0] sm:$0xff]
        %v475 = vld [vmem:[%s354 + $0xe8] sm:$0xff]
        %v476 = vld [vmem:[%s354 + $0xf0] sm:$0xff]
        %v477 = vld [vmem:[%s354 + $0xf8] sm:$0xff]
        %v478 = vld [vmem:[#allocation6] sm:$0xf]
        %v479 = vld [vmem:[#allocation6 + $0x4] sm:$0xf]
        %v480 = vld [vmem:[#allocation6 + $0x8] sm:$0xf]
        %v481 = vld [vmem:[#allocation6 + $0xc] sm:$0xf]
        %v482 = vld [vmem:[#allocation6 + $0x10] sm:$0xf]
        %v483 = vld [vmem:[#allocation6 + $0x14] sm:$0xf]
        %v484 = vld [vmem:[#allocation6 + $0x18] sm:$0xf]
        %v485 = vld [vmem:[#allocation6 + $0x1c] sm:$0xf]
        %v486 = vld [vmem:[#allocation6 + $0x20] sm:$0xf]
        %v487 = vld [vmem:[#allocation6 + $0x24] sm:$0xf]
        %v488 = vld [vmem:[#allocation6 + $0x28] sm:$0xf]
        %v489 = vld [vmem:[#allocation6 + $0x2c] sm:$0xf]
        %v490 = vld [vmem:[#allocation6 + $0x30] sm:$0xf]
        %v491 = vld [vmem:[#allocation6 + $0x34] sm:$0xf]
        %v492 = vld [vmem:[#allocation6 + $0x38] sm:$0xf]
        %v493 = vld [vmem:[#allocation6 + $0x3c] sm:$0xf]
        %v494 = vld [vmem:[#allocation6 + $0x40] sm:$0xf]
        %v495 = vld [vmem:[#allocation6 + $0x44] sm:$0xf]
        %v496 = vld [vmem:[#allocation6 + $0x48] sm:$0xf]
        %v497 = vld [vmem:[#allocation6 + $0x4c] sm:$0xf]
        %v498 = vld [vmem:[#allocation6 + $0x50] sm:$0xf]
        %v499 = vld [vmem:[#allocation6 + $0x54] sm:$0xf]
        %v500 = vld [vmem:[#allocation6 + $0x58] sm:$0xf]
        %v501 = vld [vmem:[#allocation6 + $0x5c] sm:$0xf]
        %v502 = vld [vmem:[#allocation6 + $0x60] sm:$0xf]
        %v503 = vld [vmem:[#allocation6 + $0x64] sm:$0xf]
        %v504 = vld [vmem:[#allocation6 + $0x68] sm:$0xf]
        %v505 = vld [vmem:[#allocation6 + $0x6c] sm:$0xf]
        %v506 = vld [vmem:[#allocation6 + $0x70] sm:$0xf]
        %v507 = vld [vmem:[#allocation6 + $0x74] sm:$0xf]
        %v508 = vld [vmem:[#allocation6 + $0x78] sm:$0xf]
        %v509 = vld [vmem:[#allocation6 + $0x7c] sm:$0xf]
        %v510 = vld [vmem:[#allocation6 + $0x80] sm:$0xf]
        %v511 = vld [vmem:[#allocation6 + $0x84] sm:$0xf]
        %v512 = vld [vmem:[#allocation6 + $0x88] sm:$0xf]
        %v513 = vld [vmem:[#allocation6 + $0x8c] sm:$0xf]
        %v514 = vld [vmem:[#allocation6 + $0x90] sm:$0xf]
        %v515 = vld [vmem:[#allocation6 + $0x94] sm:$0xf]
        %v516 = vld [vmem:[#allocation6 + $0x98] sm:$0xf]
        %v517 = vld [vmem:[#allocation6 + $0x9c] sm:$0xf]
        %v518 = vld [vmem:[#allocation6 + $0xa0] sm:$0xf]
        %v519 = vld [vmem:[#allocation6 + $0xa4] sm:$0xf]
        %v520 = vld [vmem:[#allocation6 + $0xa8] sm:$0xf]
        %v521 = vld [vmem:[#allocation6 + $0xac] sm:$0xf]
        %v522 = vld [vmem:[#allocation6 + $0xb0] sm:$0xf]
        %v523 = vld [vmem:[#allocation6 + $0xb4] sm:$0xf]
        %v524 = vld [vmem:[#allocation6 + $0xb8] sm:$0xf]
        %v525 = vld [vmem:[#allocation6 + $0xbc] sm:$0xf]
        %v526 = vld [vmem:[#allocation6 + $0xc0] sm:$0xf]
        %v527 = vld [vmem:[#allocation6 + $0xc4] sm:$0xf]
        %v528 = vld [vmem:[#allocation6 + $0xc8] sm:$0xf]
        %v529 = vld [vmem:[#allocation6 + $0xcc] sm:$0xf]
        %v530 = vld [vmem:[#allocation6 + $0xd0] sm:$0xf]
        %v531 = vld [vmem:[#allocation6 + $0xd4] sm:$0xf]
        %v532 = vld [vmem:[#allocation6 + $0xd8] sm:$0xf]
        %v533 = vld [vmem:[#allocation6 + $0xdc] sm:$0xf]
        %v534 = vld [vmem:[#allocation6 + $0xe0] sm:$0xf]
        %v535 = vld [vmem:[#allocation6 + $0xe4] sm:$0xf]
        %v536 = vld [vmem:[#allocation6 + $0xe8] sm:$0xf]
        %v537 = vld [vmem:[#allocation6 + $0xec] sm:$0xf]
        %v538 = vld [vmem:[#allocation6 + $0xf0] sm:$0xf]
        %v539 = vld [vmem:[#allocation6 + $0xf4] sm:$0xf]
        %v540 = vld [vmem:[#allocation6 + $0xf8] sm:$0xf]
        %v541 = vld [vmem:[#allocation6 + $0xfc] sm:$0xf]
        %v574 = vunpack.c.l.b16 %v446
        %v575 = vunpack.c.h.b16 %v446
        %v576 = vunpack.c.l.b16 %v447
        %v577 = vunpack.c.h.b16 %v447
        %v578 = vunpack.c.l.b16 %v448
        %v579 = vunpack.c.h.b16 %v448
        %v580 = vunpack.c.l.b16 %v449
        %v581 = vunpack.c.h.b16 %v449
        %v582 = vunpack.c.l.b16 %v450
        %v583 = vunpack.c.h.b16 %v450
        %v584 = vunpack.c.l.b16 %v451
        %v585 = vunpack.c.h.b16 %v451
        %v586 = vunpack.c.l.b16 %v452
        %v587 = vunpack.c.h.b16 %v452
        %v588 = vunpack.c.l.b16 %v453
        %v589 = vunpack.c.h.b16 %v453
        %v590 = vunpack.c.l.b16 %v454
        %v591 = vunpack.c.h.b16 %v454
        %v592 = vunpack.c.l.b16 %v455
        %v593 = vunpack.c.h.b16 %v455
        %v594 = vunpack.c.l.b16 %v456
        %v595 = vunpack.c.h.b16 %v456
        %v596 = vunpack.c.l.b16 %v457
        %v597 = vunpack.c.h.b16 %v457
        %v598 = vunpack.c.l.b16 %v458
        %v599 = vunpack.c.h.b16 %v458
        %v600 = vunpack.c.l.b16 %v459
        %v601 = vunpack.c.h.b16 %v459
        %v602 = vunpack.c.l.b16 %v460
        %v603 = vunpack.c.h.b16 %v460
        %v604 = vunpack.c.l.b16 %v461
        %v605 = vunpack.c.h.b16 %v461
        %v606 = vunpack.c.l.b16 %v462
        %v607 = vunpack.c.h.b16 %v462
        %v608 = vunpack.c.l.b16 %v463
        %v609 = vunpack.c.h.b16 %v463
        %v610 = vunpack.c.l.b16 %v464
        %v611 = vunpack.c.h.b16 %v464
        %v612 = vunpack.c.l.b16 %v465
        %v613 = vunpack.c.h.b16 %v465
        %v614 = vunpack.c.l.b16 %v466
        %v615 = vunpack.c.h.b16 %v466
        %v616 = vunpack.c.l.b16 %v467
        %v617 = vunpack.c.h.b16 %v467
        %v618 = vunpack.c.l.b16 %v468
        %v619 = vunpack.c.h.b16 %v468
        %v620 = vunpack.c.l.b16 %v469
        %v621 = vunpack.c.h.b16 %v469
        %v622 = vunpack.c.l.b16 %v470
        %v623 = vunpack.c.h.b16 %v470
        %v624 = vunpack.c.l.b16 %v471
        %v625 = vunpack.c.h.b16 %v471
        %v626 = vunpack.c.l.b16 %v472
        %v627 = vunpack.c.h.b16 %v472
        %v628 = vunpack.c.l.b16 %v473
        %v629 = vunpack.c.h.b16 %v473
        %v630 = vunpack.c.l.b16 %v474
        %v631 = vunpack.c.h.b16 %v474
        %v632 = vunpack.c.l.b16 %v475
        %v633 = vunpack.c.h.b16 %v475
        %v634 = vunpack.c.l.b16 %v476
        %v635 = vunpack.c.h.b16 %v476
        %v636 = vunpack.c.l.b16 %v477
        %v637 = vunpack.c.h.b16 %v477
        %v638 = vpack.c.b16 %v578, %v574
        %v639 = vpack.c.b16 %v579, %v575
        %v640 = vpack.c.b16 %v580, %v576
        %v641 = vpack.c.b16 %v581, %v577
        %v642 = vpack.c.b16 %v586, %v582
        %v643 = vpack.c.b16 %v587, %v583
        %v644 = vpack.c.b16 %v588, %v584
        %v645 = vpack.c.b16 %v589, %v585
        %v646 = vpack.c.b16 %v594, %v590
        %v647 = vpack.c.b16 %v595, %v591
        %v648 = vpack.c.b16 %v596, %v592
        %v649 = vpack.c.b16 %v597, %v593
        %v650 = vpack.c.b16 %v602, %v598
        %v651 = vpack.c.b16 %v603, %v599
        %v652 = vpack.c.b16 %v604, %v600
        %v653 = vpack.c.b16 %v605, %v601
        %v654 = vpack.c.b16 %v610, %v606
        %v655 = vpack.c.b16 %v611, %v607
        %v656 = vpack.c.b16 %v612, %v608
        %v657 = vpack.c.b16 %v613, %v609
        %v658 = vpack.c.b16 %v618, %v614
        %v659 = vpack.c.b16 %v619, %v615
        %v660 = vpack.c.b16 %v620, %v616
        %v661 = vpack.c.b16 %v621, %v617
        %v662 = vpack.c.b16 %v626, %v622
        %v663 = vpack.c.b16 %v627, %v623
        %v664 = vpack.c.b16 %v628, %v624
        %v665 = vpack.c.b16 %v629, %v625
        %v666 = vpack.c.b16 %v634, %v630
        %v667 = vpack.c.b16 %v635, %v631
        %v668 = vpack.c.b16 %v636, %v632
        %v669 = vpack.c.b16 %v637, %v633
        %v766 = vunpack.c.l.b16 %v478
        %v767 = vunpack.c.l.b16 %v479
        %v768 = vunpack.c.l.b16 %v480
        %v769 = vunpack.c.l.b16 %v481
        %v770 = vunpack.c.l.b16 %v482
        %v771 = vunpack.c.l.b16 %v483
        %v772 = vunpack.c.l.b16 %v484
        %v773 = vunpack.c.l.b16 %v485
        %v774 = vunpack.c.l.b16 %v486
        %v775 = vunpack.c.l.b16 %v487
        %v776 = vunpack.c.l.b16 %v488
        %v777 = vunpack.c.l.b16 %v489
        %v778 = vunpack.c.l.b16 %v490
        %v779 = vunpack.c.l.b16 %v491
        %v780 = vunpack.c.l.b16 %v492
        %v781 = vunpack.c.l.b16 %v493
        %v782 = vunpack.c.l.b16 %v494
        %v783 = vunpack.c.l.b16 %v495
        %v784 = vunpack.c.l.b16 %v496
        %v785 = vunpack.c.l.b16 %v497
        %v786 = vunpack.c.l.b16 %v498
        %v787 = vunpack.c.l.b16 %v499
        %v788 = vunpack.c.l.b16 %v500
        %v789 = vunpack.c.l.b16 %v501
        %v790 = vunpack.c.l.b16 %v502
        %v791 = vunpack.c.l.b16 %v503
        %v792 = vunpack.c.l.b16 %v504
        %v793 = vunpack.c.l.b16 %v505
        %v794 = vunpack.c.l.b16 %v506
        %v795 = vunpack.c.l.b16 %v507
        %v796 = vunpack.c.l.b16 %v508
        %v797 = vunpack.c.l.b16 %v509
        %v798 = vunpack.c.l.b16 %v510
        %v799 = vunpack.c.l.b16 %v511
        %v800 = vunpack.c.l.b16 %v512
        %v801 = vunpack.c.l.b16 %v513
        %v802 = vunpack.c.l.b16 %v514
        %v803 = vunpack.c.l.b16 %v515
        %v804 = vunpack.c.l.b16 %v516
        %v805 = vunpack.c.l.b16 %v517
        %v806 = vunpack.c.l.b16 %v518
        %v807 = vunpack.c.l.b16 %v519
        %v808 = vunpack.c.l.b16 %v520
        %v809 = vunpack.c.l.b16 %v521
        %v810 = vunpack.c.l.b16 %v522
        %v811 = vunpack.c.l.b16 %v523
        %v812 = vunpack.c.l.b16 %v524
        %v813 = vunpack.c.l.b16 %v525
        %v814 = vunpack.c.l.b16 %v526
        %v815 = vunpack.c.l.b16 %v527
        %v816 = vunpack.c.l.b16 %v528
        %v817 = vunpack.c.l.b16 %v529
        %v818 = vunpack.c.l.b16 %v530
        %v819 = vunpack.c.l.b16 %v531
        %v820 = vunpack.c.l.b16 %v532
        %v821 = vunpack.c.l.b16 %v533
        %v822 = vunpack.c.l.b16 %v534
        %v823 = vunpack.c.l.b16 %v535
        %v824 = vunpack.c.l.b16 %v536
        %v825 = vunpack.c.l.b16 %v537
        %v826 = vunpack.c.l.b16 %v538
        %v827 = vunpack.c.l.b16 %v539
        %v828 = vunpack.c.l.b16 %v540
        %v829 = vunpack.c.l.b16 %v541
        %v830 = vpack.c.b16 %v767, %v766
        %v831 = vpack.c.b16 %v769, %v768
        %v832 = vpack.c.b16 %v771, %v770
        %v833 = vpack.c.b16 %v773, %v772
        %v834 = vpack.c.b16 %v775, %v774
        %v835 = vpack.c.b16 %v777, %v776
        %v836 = vpack.c.b16 %v779, %v778
        %v837 = vpack.c.b16 %v781, %v780
        %v838 = vpack.c.b16 %v783, %v782
        %v839 = vpack.c.b16 %v785, %v784
        %v840 = vpack.c.b16 %v787, %v786
        %v841 = vpack.c.b16 %v789, %v788
        %v842 = vpack.c.b16 %v791, %v790
        %v843 = vpack.c.b16 %v793, %v792
        %v844 = vpack.c.b16 %v795, %v794
        %v845 = vpack.c.b16 %v797, %v796
        %v846 = vpack.c.b16 %v799, %v798
        %v847 = vpack.c.b16 %v801, %v800
        %v848 = vpack.c.b16 %v803, %v802
        %v849 = vpack.c.b16 %v805, %v804
        %v850 = vpack.c.b16 %v807, %v806
        %v851 = vpack.c.b16 %v809, %v808
        %v852 = vpack.c.b16 %v811, %v810
        %v853 = vpack.c.b16 %v813, %v812
        %v854 = vpack.c.b16 %v815, %v814
        %v855 = vpack.c.b16 %v817, %v816
        %v856 = vpack.c.b16 %v819, %v818
        %v857 = vpack.c.b16 %v821, %v820
        %v858 = vpack.c.b16 %v823, %v822
        %v859 = vpack.c.b16 %v825, %v824
        %v860 = vpack.c.b16 %v827, %v826
        %v861 = vpack.c.b16 %v829, %v828
        %894 = vmatprep.subr.bf16.mxu0 0
        %895 = vmatpush1.bf16.msra.mxu0 %v837
        %896 = vmatprep.subr.bf16.mxu0 0
        %897 = vmatpush1.bf16.msra.mxu0 %v836
        %898 = vmatprep.subr.bf16.mxu0 0
        %899 = vmatpush1.bf16.msra.mxu0 %v835
        %900 = vmatprep.subr.bf16.mxu0 0
        %901 = vmatpush1.bf16.msra.mxu0 %v834
        %902 = vmatprep.subr.bf16.mxu0 0
        %903 = vmatpush1.bf16.msra.mxu0 %v833
        %904 = vmatprep.subr.bf16.mxu0 0
        %905 = vmatpush1.bf16.msra.mxu0 %v832
        %906 = vmatprep.subr.bf16.mxu0 0
        %907 = vmatpush1.bf16.msra.mxu0 %v831
        %908 = vmatprep.subr.bf16.mxu0 0
        %909 = vmatpush1.bf16.msra.mxu0 %v830
        %910 = vmatprep.subr.bf16.mxu0 0
        %911 = vmatpush2.bf16.msra.mxu0 %v845
        %912 = vmatprep.subr.bf16.mxu0 0
        %913 = vmatpush2.bf16.msra.mxu0 %v844
        %914 = vmatprep.subr.bf16.mxu0 0
        %915 = vmatpush2.bf16.msra.mxu0 %v843
        %916 = vmatprep.subr.bf16.mxu0 0
        %917 = vmatpush2.bf16.msra.mxu0 %v842
        %918 = vmatprep.subr.bf16.mxu0 0
        %919 = vmatpush2.bf16.msra.mxu0 %v841
        %920 = vmatprep.subr.bf16.mxu0 0
        %921 = vmatpush2.bf16.msra.mxu0 %v840
        %922 = vmatprep.subr.bf16.mxu0 0
        %923 = vmatpush2.bf16.msra.mxu0 %v839
        %924 = vmatprep.subr.bf16.mxu0 0
        %925 = vmatpush2.bf16.msra.mxu0 %v838
        %926 = vmatprep.mubr.bf16.mxu0 %v639
        %927 = vmatmul.mubr.bf16.gmra.mxu0 %v638
        %v928 = vpop.f32.mrf.mxu0
        %v929 = vadd.f32 0.0, %v928
        %v930 = vpop.f32.mrf.mxu0
        %v931 = vpop.f32.mrf.mxu0
        %v932 = vadd.f32 0.0, %v931
        %v933 = vpop.f32.mrf.mxu0
        %934 = vmatprep.mubr.bf16.mxu0 %v643
        %935 = vmatmul.mubr.bf16.gmra.mxu0 %v642
        %v936 = vpop.f32.mrf.mxu0
        %v937 = vadd.f32 0.0, %v936
        %v938 = vpop.f32.mrf.mxu0
        %v939 = vpop.f32.mrf.mxu0
        %v940 = vadd.f32 0.0, %v939
        %v941 = vpop.f32.mrf.mxu0
        %942 = vmatprep.mubr.bf16.mxu0 %v647
        %943 = vmatmul.mubr.bf16.gmra.mxu0 %v646
        %v944 = vpop.f32.mrf.mxu0
        %v945 = vadd.f32 0.0, %v944
        %v946 = vpop.f32.mrf.mxu0
        %v947 = vpop.f32.mrf.mxu0
        %v948 = vadd.f32 0.0, %v947
        %v949 = vpop.f32.mrf.mxu0
        %950 = vmatprep.mubr.bf16.mxu0 %v651
        %951 = vmatmul.mubr.bf16.gmra.mxu0 %v650
        %v952 = vpop.f32.mrf.mxu0
        %v953 = vadd.f32 0.0, %v952
        %v954 = vpop.f32.mrf.mxu0
        %v955 = vpop.f32.mrf.mxu0
        %v956 = vadd.f32 0.0, %v955
        %v957 = vpop.f32.mrf.mxu0
        %958 = vmatprep.mubr.bf16.mxu0 %v655
        %959 = vmatmul.mubr.bf16.gmra.mxu0 %v654
        %v960 = vpop.f32.mrf.mxu0
        %v961 = vadd.f32 0.0, %v960
        %v962 = vpop.f32.mrf.mxu0
        %v963 = vpop.f32.mrf.mxu0
        %v964 = vadd.f32 0.0, %v963
        %v965 = vpop.f32.mrf.mxu0
        %966 = vmatprep.mubr.bf16.mxu0 %v659
        %967 = vmatmul.mubr.bf16.gmra.mxu0 %v658
        %v968 = vpop.f32.mrf.mxu0
        %v969 = vadd.f32 0.0, %v968
        %v970 = vpop.f32.mrf.mxu0
        %v971 = vpop.f32.mrf.mxu0
        %v972 = vadd.f32 0.0, %v971
        %v973 = vpop.f32.mrf.mxu0
        %974 = vmatprep.mubr.bf16.mxu0 %v663
        %975 = vmatmul.mubr.bf16.gmra.mxu0 %v662
        %v976 = vpop.f32.mrf.mxu0
        %v977 = vadd.f32 0.0, %v976
        %v978 = vpop.f32.mrf.mxu0
        %v979 = vpop.f32.mrf.mxu0
        %v980 = vadd.f32 0.0, %v979
        %v981 = vpop.f32.mrf.mxu0
        %982 = vmatprep.mubr.bf16.mxu0 %v667
        %983 = vmatmul.mubr.bf16.gmra.mxu0 %v666
        %v984 = vpop.f32.mrf.mxu0
        %v985 = vadd.f32 0.0, %v984
        %v986 = vpop.f32.mrf.mxu0
        %v987 = vpop.f32.mrf.mxu0
        %v988 = vadd.f32 0.0, %v987
        %v989 = vpop.f32.mrf.mxu0
        %990 = vdwg.mxu0
        %991 = vmatprep.subr.bf16.mxu0 0
        %992 = vmatpush1.bf16.msra.mxu0 %v853
        %993 = vmatprep.subr.bf16.mxu0 0
        %994 = vmatpush1.bf16.msra.mxu0 %v852
        %995 = vmatprep.subr.bf16.mxu0 0
        %996 = vmatpush1.bf16.msra.mxu0 %v851
        %997 = vmatprep.subr.bf16.mxu0 0
        %998 = vmatpush1.bf16.msra.mxu0 %v850
        %999 = vmatprep.subr.bf16.mxu0 0
        %1000 = vmatpush1.bf16.msra.mxu0 %v849
        %1001 = vmatprep.subr.bf16.mxu0 0
        %1002 = vmatpush1.bf16.msra.mxu0 %v848
        %1003 = vmatprep.subr.bf16.mxu0 0
        %1004 = vmatpush1.bf16.msra.mxu0 %v847
        %1005 = vmatprep.subr.bf16.mxu0 0
        %1006 = vmatpush1.bf16.msra.mxu0 %v846
        %1007 = vmatprep.subr.bf16.mxu0 0
        %1008 = vmatpush2.bf16.msra.mxu0 %v861
        %1009 = vmatprep.subr.bf16.mxu0 0
        %1010 = vmatpush2.bf16.msra.mxu0 %v860
        %1011 = vmatprep.subr.bf16.mxu0 0
        %1012 = vmatpush2.bf16.msra.mxu0 %v859
        %1013 = vmatprep.subr.bf16.mxu0 0
        %1014 = vmatpush2.bf16.msra.mxu0 %v858
        %1015 = vmatprep.subr.bf16.mxu0 0
        %1016 = vmatpush2.bf16.msra.mxu0 %v857
        %1017 = vmatprep.subr.bf16.mxu0 0
        %1018 = vmatpush2.bf16.msra.mxu0 %v856
        %1019 = vmatprep.subr.bf16.mxu0 0
        %1020 = vmatpush2.bf16.msra.mxu0 %v855
        %1021 = vmatprep.subr.bf16.mxu0 0
        %1022 = vmatpush2.bf16.msra.mxu0 %v854
        %1023 = vmatprep.mubr.bf16.mxu0 %v641
        %1024 = vmatmul.mubr.bf16.gmra.mxu0 %v640
        %v1025 = vpop.f32.mrf.mxu0
        %v1026 = vadd.f32 %v929, %v1025
        %v1027 = vpop.f32.mrf.mxu0
        %v1028 = vpop.f32.mrf.mxu0
        %v1029 = vadd.f32 %v932, %v1028
        %v1030 = vpop.f32.mrf.mxu0
        %1031 = vmatprep.mubr.bf16.mxu0 %v645
        %1032 = vmatmul.mubr.bf16.gmra.mxu0 %v644
        %v1033 = vpop.f32.mrf.mxu0
        %v1034 = vadd.f32 %v937, %v1033
        %v1035 = vpop.f32.mrf.mxu0
        %v1036 = vpop.f32.mrf.mxu0
        %v1037 = vadd.f32 %v940, %v1036
        %v1038 = vpop.f32.mrf.mxu0
        %1039 = vmatprep.mubr.bf16.mxu0 %v649
        %1040 = vmatmul.mubr.bf16.gmra.mxu0 %v648
        %v1041 = vpop.f32.mrf.mxu0
        %v1042 = vadd.f32 %v945, %v1041
        %v1043 = vpop.f32.mrf.mxu0
        %v1044 = vpop.f32.mrf.mxu0
        %v1045 = vadd.f32 %v948, %v1044
        %v1046 = vpop.f32.mrf.mxu0
        %1047 = vmatprep.mubr.bf16.mxu0 %v653
        %1048 = vmatmul.mubr.bf16.gmra.mxu0 %v652
        %v1049 = vpop.f32.mrf.mxu0
        %v1050 = vadd.f32 %v953, %v1049
        %v1051 = vpop.f32.mrf.mxu0
        %v1052 = vpop.f32.mrf.mxu0
        %v1053 = vadd.f32 %v956, %v1052
        %v1054 = vpop.f32.mrf.mxu0
        %1055 = vmatprep.mubr.bf16.mxu0 %v657
        %1056 = vmatmul.mubr.bf16.gmra.mxu0 %v656
        %v1057 = vpop.f32.mrf.mxu0
        %v1058 = vadd.f32 %v961, %v1057
        %v1059 = vpop.f32.mrf.mxu0
        %v1060 = vpop.f32.mrf.mxu0
        %v1061 = vadd.f32 %v964, %v1060
        %v1062 = vpop.f32.mrf.mxu0
        %1063 = vmatprep.mubr.bf16.mxu0 %v661
        %1064 = vmatmul.mubr.bf16.gmra.mxu0 %v660
        %v1065 = vpop.f32.mrf.mxu0
        %v1066 = vadd.f32 %v969, %v1065
        %v1067 = vpop.f32.mrf.mxu0
        %v1068 = vpop.f32.mrf.mxu0
        %v1069 = vadd.f32 %v972, %v1068
        %v1070 = vpop.f32.mrf.mxu0
        %1071 = vmatprep.mubr.bf16.mxu0 %v665
        %1072 = vmatmul.mubr.bf16.gmra.mxu0 %v664
        %v1073 = vpop.f32.mrf.mxu0
        %v1074 = vadd.f32 %v977, %v1073
        %v1075 = vpop.f32.mrf.mxu0
        %v1076 = vpop.f32.mrf.mxu0
        %v1077 = vadd.f32 %v980, %v1076
        %v1078 = vpop.f32.mrf.mxu0
        %1079 = vmatprep.mubr.bf16.mxu0 %v669
        %1080 = vmatmul.mubr.bf16.gmra.mxu0 %v668
        %v1081 = vpop.f32.mrf.mxu0
        %v1082 = vadd.f32 %v985, %v1081
        %v1083 = vpop.f32.mrf.mxu0
        %v1084 = vpop.f32.mrf.mxu0
        %v1085 = vadd.f32 %v988, %v1084
        %v1086 = vpop.f32.mrf.mxu0
        %1087 = vdwg.mxu0
        %v1088 = vadd.f32 %v430, %v1026
        %v1089 = vadd.f32 %v431, %v1029
        %v1090 = vadd.f32 %v432, %v1034
        %v1091 = vadd.f32 %v433, %v1037
        %v1092 = vadd.f32 %v434, %v1042
        %v1093 = vadd.f32 %v435, %v1045
        %v1094 = vadd.f32 %v436, %v1050
        %v1095 = vadd.f32 %v437, %v1053
        %v1096 = vadd.f32 %v438, %v1058
        %v1097 = vadd.f32 %v439, %v1061
        %v1098 = vadd.f32 %v440, %v1066
        %v1099 = vadd.f32 %v441, %v1069
        %v1100 = vadd.f32 %v442, %v1074
        %v1101 = vadd.f32 %v443, %v1077
        %v1102 = vadd.f32 %v444, %v1082
        %v1103 = vadd.f32 %v445, %v1085
        %1104 = vst [vmem:[#allocation2] sm:$0xff] %v1088
        %1105 = vst [vmem:[#allocation2 + $0x8] sm:$0xff] %v1089
        %1106 = vst [vmem:[#allocation2 + $0x10] sm:$0xff] %v1090
        %1107 = vst [vmem:[#allocation2 + $0x18] sm:$0xff] %v1091
        %1108 = vst [vmem:[#allocation2 + $0x20] sm:$0xff] %v1092
        %1109 = vst [vmem:[#allocation2 + $0x28] sm:$0xff] %v1093
        %1110 = vst [vmem:[#allocation2 + $0x30] sm:$0xff] %v1094
        %1111 = vst [vmem:[#allocation2 + $0x38] sm:$0xff] %v1095
        %1112 = vst [vmem:[#allocation2 + $0x40] sm:$0xff] %v1096
        %1113 = vst [vmem:[#allocation2 + $0x48] sm:$0xff] %v1097
        %1114 = vst [vmem:[#allocation2 + $0x50] sm:$0xff] %v1098
        %1115 = vst [vmem:[#allocation2 + $0x58] sm:$0xff] %v1099
        %1116 = vst [vmem:[#allocation2 + $0x60] sm:$0xff] %v1100
        %1117 = vst [vmem:[#allocation2 + $0x68] sm:$0xff] %v1101
        %1118 = vst [vmem:[#allocation2 + $0x70] sm:$0xff] %v1102
        %1119 = vst [vmem:[#allocation2 + $0x78] sm:$0xff] %v1103
        // Predicated region
        $region69: #{tpu_custom_call.1} parent=47 // pred_check
          %p1120 = pneg %p410
        $region70: #{tpu_custom_call.1} parent=47 // pred_check_branch
          %1122 = sbr.rel (%p1120) target = $region72
        $region71: #{tpu_custom_call.1} parent=47 // pred_region
          %v1123 = vld [vmem:[#allocation2] sm:$0xff]
          %v1124 = vld [vmem:[#allocation2 + $0x8] sm:$0xff]
          %v1125 = vld [vmem:[#allocation2 + $0x10] sm:$0xff]
          %v1126 = vld [vmem:[#allocation2 + $0x18] sm:$0xff]
          %v1127 = vld [vmem:[#allocation2 + $0x20] sm:$0xff]
          %v1128 = vld [vmem:[#allocation2 + $0x28] sm:$0xff]
          %v1129 = vld [vmem:[#allocation2 + $0x30] sm:$0xff]
          %v1130 = vld [vmem:[#allocation2 + $0x38] sm:$0xff]
          %v1131 = vld [vmem:[#allocation2 + $0x40] sm:$0xff]
          %v1132 = vld [vmem:[#allocation2 + $0x48] sm:$0xff]
          %v1133 = vld [vmem:[#allocation2 + $0x50] sm:$0xff]
          %v1134 = vld [vmem:[#allocation2 + $0x58] sm:$0xff]
          %v1135 = vld [vmem:[#allocation2 + $0x60] sm:$0xff]
          %v1136 = vld [vmem:[#allocation2 + $0x68] sm:$0xff]
          %v1137 = vld [vmem:[#allocation2 + $0x70] sm:$0xff]
          %v1138 = vld [vmem:[#allocation2 + $0x78] sm:$0xff]
          %v1139 = vld [vmem:[%s2] sm:$0x1]
          %v1141 = vlaneseq
          %v1142 = vshrl.u32 %v1141, 7
          %v1143 = vsub.s32 0, %v1142
          %v1144 = vrot.slane %v1139, %v1143
          %v1146 = vadd.f32 %v1123, %v1144
          %v1147 = vadd.f32 %v1124, %v1144
          %v1148 = vadd.f32 %v1125, %v1144
          %v1149 = vadd.f32 %v1126, %v1144
          %v1150 = vadd.f32 %v1127, %v1144
          %v1151 = vadd.f32 %v1128, %v1144
          %v1152 = vadd.f32 %v1129, %v1144
          %v1153 = vadd.f32 %v1130, %v1144
          %v1154 = vadd.f32 %v1131, %v1144
          %v1155 = vadd.f32 %v1132, %v1144
          %v1156 = vadd.f32 %v1133, %v1144
          %v1157 = vadd.f32 %v1134, %v1144
          %v1158 = vadd.f32 %v1135, %v1144
          %v1159 = vadd.f32 %v1136, %v1144
          %v1160 = vadd.f32 %v1137, %v1144
          %v1161 = vadd.f32 %v1138, %v1144
          %v1162 = vmax.f32 %v1146, 0.0
          %v1163 = vmax.f32 %v1147, 0.0
          %v1164 = vmax.f32 %v1148, 0.0
          %v1165 = vmax.f32 %v1149, 0.0
          %v1166 = vmax.f32 %v1150, 0.0
          %v1167 = vmax.f32 %v1151, 0.0
          %v1168 = vmax.f32 %v1152, 0.0
          %v1169 = vmax.f32 %v1153, 0.0
          %v1170 = vmax.f32 %v1154, 0.0
          %v1171 = vmax.f32 %v1155, 0.0
          %v1172 = vmax.f32 %v1156, 0.0
          %v1173 = vmax.f32 %v1157, 0.0
          %v1174 = vmax.f32 %v1158, 0.0
          %v1175 = vmax.f32 %v1159, 0.0
          %v1176 = vmax.f32 %v1160, 0.0
          %v1177 = vmax.f32 %v1161, 0.0
          %v1178 = vpack.c.bf16 %v1163, %v1162
          %v1179 = vpack.c.bf16 %v1165, %v1164
          %v1180 = vpack.c.bf16 %v1167, %v1166
          %v1181 = vpack.c.bf16 %v1169, %v1168
          %v1182 = vpack.c.bf16 %v1171, %v1170
          %v1183 = vpack.c.bf16 %v1173, %v1172
          %v1184 = vpack.c.bf16 %v1175, %v1174
          %v1185 = vpack.c.bf16 %v1177, %v1176
          %v1186 = vld [vmem:[#allocation8] sm:$0xf]
          %v1187 = vld [vmem:[#allocation8 + $0x4] sm:$0xf]
          %v1188 = vld [vmem:[#allocation8 + $0x8] sm:$0xf]
          %v1189 = vld [vmem:[#allocation8 + $0xc] sm:$0xf]
          %v1190 = vld [vmem:[#allocation8 + $0x10] sm:$0xf]
          %v1191 = vld [vmem:[#allocation8 + $0x14] sm:$0xf]
          %v1192 = vld [vmem:[#allocation8 + $0x18] sm:$0xf]
          %v1193 = vld [vmem:[#allocation8 + $0x1c] sm:$0xf]
          %v1194 = vld [vmem:[#allocation8 + $0x20] sm:$0xf]
          %v1195 = vld [vmem:[#allocation8 + $0x24] sm:$0xf]
          %v1196 = vld [vmem:[#allocation8 + $0x28] sm:$0xf]
          %v1197 = vld [vmem:[#allocation8 + $0x2c] sm:$0xf]
          %v1198 = vld [vmem:[#allocation8 + $0x30] sm:$0xf]
          %v1199 = vld [vmem:[#allocation8 + $0x34] sm:$0xf]
          %v1200 = vld [vmem:[#allocation8 + $0x38] sm:$0xf]
          %v1201 = vld [vmem:[#allocation8 + $0x3c] sm:$0xf]
          %v1202 = vld [vmem:[%s4] sm:$0x1]
          %v1204 = vlaneseq
          %v1205 = vshrl.u32 %v1204, 7
          %v1206 = vsub.s32 0, %v1205
          %v1207 = vrot.slane %v1202, %v1206
          %v1225 = vunpack.c.l.b16 %v1186
          %v1226 = vunpack.c.l.b16 %v1187
          %v1227 = vunpack.c.l.b16 %v1188
          %v1228 = vunpack.c.l.b16 %v1189
          %v1229 = vunpack.c.l.b16 %v1190
          %v1230 = vunpack.c.l.b16 %v1191
          %v1231 = vunpack.c.l.b16 %v1192
          %v1232 = vunpack.c.l.b16 %v1193
          %v1233 = vunpack.c.l.b16 %v1194
          %v1234 = vunpack.c.l.b16 %v1195
          %v1235 = vunpack.c.l.b16 %v1196
          %v1236 = vunpack.c.l.b16 %v1197
          %v1237 = vunpack.c.l.b16 %v1198
          %v1238 = vunpack.c.l.b16 %v1199
          %v1239 = vunpack.c.l.b16 %v1200
          %v1240 = vunpack.c.l.b16 %v1201
          %v1241 = vpack.c.b16 %v1226, %v1225
          %v1242 = vpack.c.b16 %v1228, %v1227
          %v1243 = vpack.c.b16 %v1230, %v1229
          %v1244 = vpack.c.b16 %v1232, %v1231
          %v1245 = vpack.c.b16 %v1234, %v1233
          %v1246 = vpack.c.b16 %v1236, %v1235
          %v1247 = vpack.c.b16 %v1238, %v1237
          %v1248 = vpack.c.b16 %v1240, %v1239
          %1257 = vmatprep.subr.bf16.mxu0 0
          %1258 = vmatpush1.bf16.msra.mxu0 %v1248
          %1259 = vmatprep.subr.bf16.mxu0 0
          %1260 = vmatpush1.bf16.msra.mxu0 %v1247
          %1261 = vmatprep.subr.bf16.mxu0 0
          %1262 = vmatpush1.bf16.msra.mxu0 %v1246
          %1263 = vmatprep.subr.bf16.mxu0 0
          %1264 = vmatpush1.bf16.msra.mxu0 %v1245
          %1265 = vmatprep.subr.bf16.mxu0 0
          %1266 = vmatpush1.bf16.msra.mxu0 %v1244
          %1267 = vmatprep.subr.bf16.mxu0 0
          %1268 = vmatpush1.bf16.msra.mxu0 %v1243
          %1269 = vmatprep.subr.bf16.mxu0 0
          %1270 = vmatpush1.bf16.msra.mxu0 %v1242
          %1271 = vmatprep.subr.bf16.mxu0 0
          %1272 = vmatpush1.bf16.msra.mxu0 %v1241
          %1273 = vmatprep.subr.bf16.mxu0 0
          %1274 = vmatpush2.bf16.msra.mxu0 0
          %1275 = vmatprep.subr.bf16.mxu0 0
          %1276 = vmatpush2.bf16.msra.mxu0 0
          %1277 = vmatprep.subr.bf16.mxu0 0
          %1278 = vmatpush2.bf16.msra.mxu0 0
          %1279 = vmatprep.subr.bf16.mxu0 0
          %1280 = vmatpush2.bf16.msra.mxu0 0
          %1281 = vmatprep.subr.bf16.mxu0 0
          %1282 = vmatpush2.bf16.msra.mxu0 0
          %1283 = vmatprep.subr.bf16.mxu0 0
          %1284 = vmatpush2.bf16.msra.mxu0 0
          %1285 = vmatprep.subr.bf16.mxu0 0
          %1286 = vmatpush2.bf16.msra.mxu0 0
          %1287 = vmatprep.subr.bf16.mxu0 0
          %1288 = vmatpush2.bf16.msra.mxu0 0
          %1289 = vmatprep.mubr.bf16.mxu0 0
          %1290 = vmatmul.mubr.bf16.gmra.mxu0 %v1178
          %v1291 = vpop.f32.mrf.mxu0
          %v1292 = vadd.f32 %v1207, %v1291
          %v1293 = vpop.f32.mrf.mxu0
          %v1294 = vpop.f32.mrf.mxu0
          %v1295 = vadd.f32 %v1207, %v1294
          %v1296 = vpop.f32.mrf.mxu0
          %1297 = vmatprep.mubr.bf16.mxu0 0
          %1298 = vmatmul.mubr.bf16.gmra.mxu0 %v1179
          %v1299 = vpop.f32.mrf.mxu0
          %v1300 = vadd.f32 %v1207, %v1299
          %v1301 = vpop.f32.mrf.mxu0
          %v1302 = vpop.f32.mrf.mxu0
          %v1303 = vadd.f32 %v1207, %v1302
          %v1304 = vpop.f32.mrf.mxu0
          %1305 = vmatprep.mubr.bf16.mxu0 0
          %1306 = vmatmul.mubr.bf16.gmra.mxu0 %v1180
          %v1307 = vpop.f32.mrf.mxu0
          %v1308 = vadd.f32 %v1207, %v1307
          %v1309 = vpop.f32.mrf.mxu0
          %v1310 = vpop.f32.mrf.mxu0
          %v1311 = vadd.f32 %v1207, %v1310
          %v1312 = vpop.f32.mrf.mxu0
          %1313 = vmatprep.mubr.bf16.mxu0 0
          %1314 = vmatmul.mubr.bf16.gmra.mxu0 %v1181
          %v1315 = vpop.f32.mrf.mxu0
          %v1316 = vadd.f32 %v1207, %v1315
          %v1317 = vpop.f32.mrf.mxu0
          %v1318 = vpop.f32.mrf.mxu0
          %v1319 = vadd.f32 %v1207, %v1318
          %v1320 = vpop.f32.mrf.mxu0
          %1321 = vmatprep.mubr.bf16.mxu0 0
          %1322 = vmatmul.mubr.bf16.gmra.mxu0 %v1182
          %v1323 = vpop.f32.mrf.mxu0
          %v1324 = vadd.f32 %v1207, %v1323
          %v1325 = vpop.f32.mrf.mxu0
          %v1326 = vpop.f32.mrf.mxu0
          %v1327 = vadd.f32 %v1207, %v1326
          %v1328 = vpop.f32.mrf.mxu0
          %1329 = vmatprep.mubr.bf16.mxu0 0
          %1330 = vmatmul.mubr.bf16.gmra.mxu0 %v1183
          %v1331 = vpop.f32.mrf.mxu0
          %v1332 = vadd.f32 %v1207, %v1331
          %v1333 = vpop.f32.mrf.mxu0
          %v1334 = vpop.f32.mrf.mxu0
          %v1335 = vadd.f32 %v1207, %v1334
          %v1336 = vpop.f32.mrf.mxu0
          %1337 = vmatprep.mubr.bf16.mxu0 0
          %1338 = vmatmul.mubr.bf16.gmra.mxu0 %v1184
          %v1339 = vpop.f32.mrf.mxu0
          %v1340 = vadd.f32 %v1207, %v1339
          %v1341 = vpop.f32.mrf.mxu0
          %v1342 = vpop.f32.mrf.mxu0
          %v1343 = vadd.f32 %v1207, %v1342
          %v1344 = vpop.f32.mrf.mxu0
          %1345 = vmatprep.mubr.bf16.mxu0 0
          %1346 = vmatmul.mubr.bf16.gmra.mxu0 %v1185
          %v1347 = vpop.f32.mrf.mxu0
          %v1348 = vadd.f32 %v1207, %v1347
          %v1349 = vpop.f32.mrf.mxu0
          %v1350 = vpop.f32.mrf.mxu0
          %v1351 = vadd.f32 %v1207, %v1350
          %v1352 = vpop.f32.mrf.mxu0
          %1353 = vdwg.mxu0
          %v1354 = vmax.f32 %v1292, 0.0
          %v1355 = vmax.f32 %v1295, 0.0
          %v1356 = vmax.f32 %v1300, 0.0
          %v1357 = vmax.f32 %v1303, 0.0
          %v1358 = vmax.f32 %v1308, 0.0
          %v1359 = vmax.f32 %v1311, 0.0
          %v1360 = vmax.f32 %v1316, 0.0
          %v1361 = vmax.f32 %v1319, 0.0
          %v1362 = vmax.f32 %v1324, 0.0
          %v1363 = vmax.f32 %v1327, 0.0
          %v1364 = vmax.f32 %v1332, 0.0
          %v1365 = vmax.f32 %v1335, 0.0
          %v1366 = vmax.f32 %v1340, 0.0
          %v1367 = vmax.f32 %v1343, 0.0
          %v1368 = vmax.f32 %v1348, 0.0
          %v1369 = vmax.f32 %v1351, 0.0
          %v1370 = vpack.c.bf16 %v1355, %v1354
          %v1371 = vpack.c.bf16 %v1357, %v1356
          %v1372 = vpack.c.bf16 %v1359, %v1358
          %v1373 = vpack.c.bf16 %v1361, %v1360
          %v1374 = vpack.c.bf16 %v1363, %v1362
          %v1375 = vpack.c.bf16 %v1365, %v1364
          %v1376 = vpack.c.bf16 %v1367, %v1366
          %v1377 = vpack.c.bf16 %v1369, %v1368
          %v1386 = vunpack.c.l.b16 %v1370
          %v1387 = vunpack.c.h.b16 %v1370
          %v1388 = vunpack.c.l.b16 %v1371
          %v1389 = vunpack.c.h.b16 %v1371
          %v1390 = vunpack.c.l.b16 %v1372
          %v1391 = vunpack.c.h.b16 %v1372
          %v1392 = vunpack.c.l.b16 %v1373
          %v1393 = vunpack.c.h.b16 %v1373
          %v1394 = vunpack.c.l.b16 %v1374
          %v1395 = vunpack.c.h.b16 %v1374
          %v1396 = vunpack.c.l.b16 %v1375
          %v1397 = vunpack.c.h.b16 %v1375
          %v1398 = vunpack.c.l.b16 %v1376
          %v1399 = vunpack.c.h.b16 %v1376
          %v1400 = vunpack.c.l.b16 %v1377
          %v1401 = vunpack.c.h.b16 %v1377
          %v1402 = vpack.c.b16 %v1386, %v1386
          %v1403 = vpack.c.b16 %v1387, %v1387
          %v1404 = vpack.c.b16 %v1388, %v1388
          %v1405 = vpack.c.b16 %v1389, %v1389
          %v1406 = vpack.c.b16 %v1390, %v1390
          %v1407 = vpack.c.b16 %v1391, %v1391
          %v1408 = vpack.c.b16 %v1392, %v1392
          %v1409 = vpack.c.b16 %v1393, %v1393
          %v1410 = vpack.c.b16 %v1394, %v1394
          %v1411 = vpack.c.b16 %v1395, %v1395
          %v1412 = vpack.c.b16 %v1396, %v1396
          %v1413 = vpack.c.b16 %v1397, %v1397
          %v1414 = vpack.c.b16 %v1398, %v1398
          %v1415 = vpack.c.b16 %v1399, %v1399
          %v1416 = vpack.c.b16 %v1400, %v1400
          %v1417 = vpack.c.b16 %v1401, %v1401
          %1434 = vst [vmem:[%s396] sm:$0xf] %v1402
          %1435 = vst [vmem:[%s396 + $0x4] sm:$0xf] %v1403
          %1436 = vst [vmem:[%s396 + $0x8] sm:$0xf] %v1404
          %1437 = vst [vmem:[%s396 + $0xc] sm:$0xf] %v1405
          %1438 = vst [vmem:[%s396 + $0x10] sm:$0xf] %v1406
          %1439 = vst [vmem:[%s396 + $0x14] sm:$0xf] %v1407
          %1440 = vst [vmem:[%s396 + $0x18] sm:$0xf] %v1408
          %1441 = vst [vmem:[%s396 + $0x1c] sm:$0xf] %v1409
          %1442 = vst [vmem:[%s396 + $0x20] sm:$0xf] %v1410
          %1443 = vst [vmem:[%s396 + $0x24] sm:$0xf] %v1411
          %1444 = vst [vmem:[%s396 + $0x28] sm:$0xf] %v1412
          %1445 = vst [vmem:[%s396 + $0x2c] sm:$0xf] %v1413
          %1446 = vst [vmem:[%s396 + $0x30] sm:$0xf] %v1414
          %1447 = vst [vmem:[%s396 + $0x34] sm:$0xf] %v1415
          %1448 = vst [vmem:[%s396 + $0x38] sm:$0xf] %v1416
          %1449 = vst [vmem:[%s396 + $0x3c] sm:$0xf] %v1417
          %v1450 = vld [vmem:[#allocation9] sm:$0xf]
          %v1451 = vld [vmem:[#allocation9 + $0x4] sm:$0xf]
          %v1452 = vld [vmem:[#allocation9 + $0x8] sm:$0xf]
          %v1453 = vld [vmem:[#allocation9 + $0xc] sm:$0xf]
          %v1454 = vld [vmem:[#allocation9 + $0x10] sm:$0xf]
          %v1455 = vld [vmem:[#allocation9 + $0x14] sm:$0xf]
          %v1456 = vld [vmem:[#allocation9 + $0x18] sm:$0xf]
          %v1457 = vld [vmem:[#allocation9 + $0x1c] sm:$0xf]
          %v1458 = vld [vmem:[#allocation9 + $0x20] sm:$0xf]
          %v1459 = vld [vmem:[#allocation9 + $0x24] sm:$0xf]
          %v1460 = vld [vmem:[#allocation9 + $0x28] sm:$0xf]
          %v1461 = vld [vmem:[#allocation9 + $0x2c] sm:$0xf]
          %v1462 = vld [vmem:[#allocation9 + $0x30] sm:$0xf]
          %v1463 = vld [vmem:[#allocation9 + $0x34] sm:$0xf]
          %v1464 = vld [vmem:[#allocation9 + $0x38] sm:$0xf]
          %v1465 = vld [vmem:[#allocation9 + $0x3c] sm:$0xf]
          %v1466 = vld [vmem:[%s6] sm:$0x1]
          %v1468 = vlaneseq
          %v1469 = vshrl.u32 %v1468, 7
          %v1470 = vsub.s32 0, %v1469
          %v1471 = vrot.slane %v1466, %v1470
          %v1489 = vunpack.c.l.b16 %v1450
          %v1490 = vunpack.c.l.b16 %v1451
          %v1491 = vunpack.c.l.b16 %v1452
          %v1492 = vunpack.c.l.b16 %v1453
          %v1493 = vunpack.c.l.b16 %v1454
          %v1494 = vunpack.c.l.b16 %v1455
          %v1495 = vunpack.c.l.b16 %v1456
          %v1496 = vunpack.c.l.b16 %v1457
          %v1497 = vunpack.c.l.b16 %v1458
          %v1498 = vunpack.c.l.b16 %v1459
          %v1499 = vunpack.c.l.b16 %v1460
          %v1500 = vunpack.c.l.b16 %v1461
          %v1501 = vunpack.c.l.b16 %v1462
          %v1502 = vunpack.c.l.b16 %v1463
          %v1503 = vunpack.c.l.b16 %v1464
          %v1504 = vunpack.c.l.b16 %v1465
          %v1505 = vpack.c.b16 %v1490, %v1489
          %v1506 = vpack.c.b16 %v1492, %v1491
          %v1507 = vpack.c.b16 %v1494, %v1493
          %v1508 = vpack.c.b16 %v1496, %v1495
          %v1509 = vpack.c.b16 %v1498, %v1497
          %v1510 = vpack.c.b16 %v1500, %v1499
          %v1511 = vpack.c.b16 %v1502, %v1501
          %v1512 = vpack.c.b16 %v1504, %v1503
          %1521 = vmatprep.subr.bf16.mxu0 0
          %1522 = vmatpush1.bf16.msra.mxu0 %v1512
          %1523 = vmatprep.subr.bf16.mxu0 0
          %1524 = vmatpush1.bf16.msra.mxu0 %v1511
          %1525 = vmatprep.subr.bf16.mxu0 0
          %1526 = vmatpush1.bf16.msra.mxu0 %v1510
          %1527 = vmatprep.subr.bf16.mxu0 0
          %1528 = vmatpush1.bf16.msra.mxu0 %v1509
          %1529 = vmatprep.subr.bf16.mxu0 0
          %1530 = vmatpush1.bf16.msra.mxu0 %v1508
          %1531 = vmatprep.subr.bf16.mxu0 0
          %1532 = vmatpush1.bf16.msra.mxu0 %v1507
          %1533 = vmatprep.subr.bf16.mxu0 0
          %1534 = vmatpush1.bf16.msra.mxu0 %v1506
          %1535 = vmatprep.subr.bf16.mxu0 0
          %1536 = vmatpush1.bf16.msra.mxu0 %v1505
          %1537 = vmatprep.subr.bf16.mxu0 0
          %1538 = vmatpush2.bf16.msra.mxu0 0
          %1539 = vmatprep.subr.bf16.mxu0 0
          %1540 = vmatpush2.bf16.msra.mxu0 0
          %1541 = vmatprep.subr.bf16.mxu0 0
          %1542 = vmatpush2.bf16.msra.mxu0 0
          %1543 = vmatprep.subr.bf16.mxu0 0
          %1544 = vmatpush2.bf16.msra.mxu0 0
          %1545 = vmatprep.subr.bf16.mxu0 0
          %1546 = vmatpush2.bf16.msra.mxu0 0
          %1547 = vmatprep.subr.bf16.mxu0 0
          %1548 = vmatpush2.bf16.msra.mxu0 0
          %1549 = vmatprep.subr.bf16.mxu0 0
          %1550 = vmatpush2.bf16.msra.mxu0 0
          %1551 = vmatprep.subr.bf16.mxu0 0
          %1552 = vmatpush2.bf16.msra.mxu0 0
          %1553 = vmatprep.mubr.bf16.mxu0 0
          %1554 = vmatmul.mubr.bf16.gmra.mxu0 %v1370
          %v1555 = vpop.f32.mrf.mxu0
          %v1556 = vadd.f32 %v1471, %v1555
          %v1557 = vpop.f32.mrf.mxu0
          %v1558 = vpop.f32.mrf.mxu0
          %v1559 = vadd.f32 %v1471, %v1558
          %v1560 = vpop.f32.mrf.mxu0
          %1561 = vmatprep.mubr.bf16.mxu0 0
          %1562 = vmatmul.mubr.bf16.gmra.mxu0 %v1371
          %v1563 = vpop.f32.mrf.mxu0
          %v1564 = vadd.f32 %v1471, %v1563
          %v1565 = vpop.f32.mrf.mxu0
          %v1566 = vpop.f32.mrf.mxu0
          %v1567 = vadd.f32 %v1471, %v1566
          %v1568 = vpop.f32.mrf.mxu0
          %1569 = vmatprep.mubr.bf16.mxu0 0
          %1570 = vmatmul.mubr.bf16.gmra.mxu0 %v1372
          %v1571 = vpop.f32.mrf.mxu0
          %v1572 = vadd.f32 %v1471, %v1571
          %v1573 = vpop.f32.mrf.mxu0
          %v1574 = vpop.f32.mrf.mxu0
          %v1575 = vadd.f32 %v1471, %v1574
          %v1576 = vpop.f32.mrf.mxu0
          %1577 = vmatprep.mubr.bf16.mxu0 0
          %1578 = vmatmul.mubr.bf16.gmra.mxu0 %v1373
          %v1579 = vpop.f32.mrf.mxu0
          %v1580 = vadd.f32 %v1471, %v1579
          %v1581 = vpop.f32.mrf.mxu0
          %v1582 = vpop.f32.mrf.mxu0
          %v1583 = vadd.f32 %v1471, %v1582
          %v1584 = vpop.f32.mrf.mxu0
          %1585 = vmatprep.mubr.bf16.mxu0 0
          %1586 = vmatmul.mubr.bf16.gmra.mxu0 %v1374
          %v1587 = vpop.f32.mrf.mxu0
          %v1588 = vadd.f32 %v1471, %v1587
          %v1589 = vpop.f32.mrf.mxu0
          %v1590 = vpop.f32.mrf.mxu0
          %v1591 = vadd.f32 %v1471, %v1590
          %v1592 = vpop.f32.mrf.mxu0
          %1593 = vmatprep.mubr.bf16.mxu0 0
          %1594 = vmatmul.mubr.bf16.gmra.mxu0 %v1375
          %v1595 = vpop.f32.mrf.mxu0
          %v1596 = vadd.f32 %v1471, %v1595
          %v1597 = vpop.f32.mrf.mxu0
          %v1598 = vpop.f32.mrf.mxu0
          %v1599 = vadd.f32 %v1471, %v1598
          %v1600 = vpop.f32.mrf.mxu0
          %1601 = vmatprep.mubr.bf16.mxu0 0
          %1602 = vmatmul.mubr.bf16.gmra.mxu0 %v1376
          %v1603 = vpop.f32.mrf.mxu0
          %v1604 = vadd.f32 %v1471, %v1603
          %v1605 = vpop.f32.mrf.mxu0
          %v1606 = vpop.f32.mrf.mxu0
          %v1607 = vadd.f32 %v1471, %v1606
          %v1608 = vpop.f32.mrf.mxu0
          %1609 = vmatprep.mubr.bf16.mxu0 0
          %1610 = vmatmul.mubr.bf16.gmra.mxu0 %v1377
          %v1611 = vpop.f32.mrf.mxu0
          %v1612 = vadd.f32 %v1471, %v1611
          %v1613 = vpop.f32.mrf.mxu0
          %v1614 = vpop.f32.mrf.mxu0
          %v1615 = vadd.f32 %v1471, %v1614
          %v1616 = vpop.f32.mrf.mxu0
          %1617 = vdwg.mxu0
          %1618 = vst [vmem:[%s403] sm:$0xff] %v1556
          %1619 = vst [vmem:[%s403 + $0x8] sm:$0xff] %v1559
          %1620 = vst [vmem:[%s403 + $0x10] sm:$0xff] %v1564
          %1621 = vst [vmem:[%s403 + $0x18] sm:$0xff] %v1567
          %1622 = vst [vmem:[%s403 + $0x20] sm:$0xff] %v1572
          %1623 = vst [vmem:[%s403 + $0x28] sm:$0xff] %v1575
          %1624 = vst [vmem:[%s403 + $0x30] sm:$0xff] %v1580
          %1625 = vst [vmem:[%s403 + $0x38] sm:$0xff] %v1583
          %1626 = vst [vmem:[%s403 + $0x40] sm:$0xff] %v1588
          %1627 = vst [vmem:[%s403 + $0x48] sm:$0xff] %v1591
          %1628 = vst [vmem:[%s403 + $0x50] sm:$0xff] %v1596
          %1629 = vst [vmem:[%s403 + $0x58] sm:$0xff] %v1599
          %1630 = vst [vmem:[%s403 + $0x60] sm:$0xff] %v1604
          %1631 = vst [vmem:[%s403 + $0x68] sm:$0xff] %v1607
          %1632 = vst [vmem:[%s403 + $0x70] sm:$0xff] %v1612
          %1633 = vst [vmem:[%s403 + $0x78] sm:$0xff] %v1615
        $region72: #{tpu_custom_call.1} parent=47 // pred_fallthru
          _
        %s1634 = sand.u32 %s210, 1
        %s1635 = scalar_lea.sflag [#allocation5], %s1634
        %s1636 = sand.u32 %s210, 1
        %s1637 = smul.addr %s1636, 64
        %s1638 = scalar_lea.vmem [#allocation11], %s1637
        %s1639 = sand.u32 %s236, 1
        %s1640 = scalar_lea.sflag [#allocation13], %s1639
        %s1641 = sand.u32 %s236, 1
        %s1642 = smul.addr %s1641, 128
        %s1643 = scalar_lea.vmem [#allocation12], %s1642
        // Predicated region
        $region73: #{tpu_custom_call.1} parent=47 // pred_check
          %p1644 = pneg %p220
        $region74: #{tpu_custom_call.1} parent=47 // pred_check_branch
          %1646 = sbr.rel (%p1644) target = $region76
        $region75: #{tpu_custom_call.1} parent=47 // pred_region
          %s1647 = smul.u32 16, %s35
          %s1649 = ssub.s32 1024, 1024
          %1650 = vsyncadd %s1635, %s1649
          %s1651 = smul.addr %s1647, 64
          %s1652 = scalar_lea.hbm %s7, %s1651
          %s1653 = sshll.u32 %s1638, 4
          %s1654 = int_to_ptr.vmem [resolvable:$true] %s1653
          %1659 = dma.vmem_to_hbm [thread:$0]  %s1654, 1024, %s1652, %s1635, 64, 64, 4
        $region76: #{tpu_custom_call.1} parent=47 // pred_fallthru
          _
        // Predicated region
        $region77: #{tpu_custom_call.1} parent=47 // pred_check
          %p1660 = pneg %p246
        $region78: #{tpu_custom_call.1} parent=47 // pred_check_branch
          %1662 = sbr.rel (%p1660) target = $region80
        $region79: #{tpu_custom_call.1} parent=47 // pred_region
          %s1663 = smul.u32 16, %s35
          %s1665 = ssub.s32 2048, 2048
          %1666 = vsyncadd %s1640, %s1665
          %s1667 = smul.addr %s1663, 128
          %s1668 = scalar_lea.hbm %s8, %s1667
          %s1669 = sshll.u32 %s1643, 4
          %s1670 = int_to_ptr.vmem [resolvable:$true] %s1669
          %1675 = dma.vmem_to_hbm [thread:$0]  %s1670, 2048, %s1668, %s1640, 128, 128, 8
        $region80: #{tpu_custom_call.1} parent=47 // pred_fallthru
          _
      $region48: #{tpu_custom_call.1} parent=5 // pred_fallthru
        _
      %p1676 = scmp.le.s32.totalorder 2, %s26
      // Predicated region
      $region81: #{tpu_custom_call.1} parent=5 // pred_check
        %p1677 = pneg %p1676
      $region82: #{tpu_custom_call.1} parent=5 // pred_check_branch
        %1679 = sbr.rel (%p1677) target = $region84
      $region83: #{tpu_custom_call.1} parent=5 // pred_region
        %s1680 = ssub.s32 %s26, 2
        // Predicated region
        $region85: #{tpu_custom_call.1} parent=83 // pred_check
          %p1681 = pneg %p226
        $region86: #{tpu_custom_call.1} parent=83 // pred_check_branch
          %1683 = sbr.rel (%p1681) target = $region88
        $region87: #{tpu_custom_call.1} parent=83 // pred_region
          %s1684 = sand.u32 %s211, 1
          %s1685 = scalar_lea.sflag [#allocation5], %s1684
          %s1686 = sand.u32 %s211, 1
          %s1687 = smul.addr %s1686, 64
          %s1688 = scalar_lea.vmem [#allocation11], %s1687
          %1689 = dma.done %s1685, 1024
        $region88: #{tpu_custom_call.1} parent=83 // pred_fallthru
          _
        // Predicated region
        $region89: #{tpu_custom_call.1} parent=83 // pred_check
          %p1690 = pneg %p252
        $region90: #{tpu_custom_call.1} parent=83 // pred_check_branch
          %1692 = sbr.rel (%p1690) target = $region92
        $region91: #{tpu_custom_call.1} parent=83 // pred_region
          %s1693 = sand.u32 %s237, 1
          %s1694 = scalar_lea.sflag [#allocation13], %s1693
          %s1695 = sand.u32 %s237, 1
          %s1696 = smul.addr %s1695, 128
          %s1697 = scalar_lea.vmem [#allocation12], %s1696
          %1698 = dma.done %s1694, 2048
        $region92: #{tpu_custom_call.1} parent=83 // pred_fallthru
          _
      $region84: #{tpu_custom_call.1} parent=5 // pred_fallthru
        _
    $region6: #{tpu_custom_call.1} parent=1 // loop_footer
      %s30 = sadd.s32 1, %s26
    $region7: #{tpu_custom_call.1} parent=1 // loop_footer_branch
      %25 = sbr.rel target = $region3
    $region8: #{tpu_custom_call.1} parent=1 // loop_exit
      _
    %1699 = vsyncpa [#allocation4], 1
    %s1700 = scalar_lea.sflag [#allocation4], 1
    %1701 = vsyncpa %s1700, 1
    %1702 = vsyncpa [#allocation7], 1
    %1703 = vsyncpa [#allocation10], 1
    %1704 = vsyncpa [#allocation5], 1
    %s1705 = scalar_lea.sflag [#allocation5], 1
    %1706 = vsyncpa %s1705, 1
    %1707 = vsyncpa [#allocation13], 1
    %s1708 = scalar_lea.sflag [#allocation13], 1
    %1709 = vsyncpa %s1708, 1

</llo_original>
